<compile_context>
chip_gen: v7x
topology: tpu7x:2x2x1
jax: 0.10.0
libtpu: 0.0.40
codegen_flags: <defaults>
</compile_context>

<pallas_src>
import functools

import jax
import jax.numpy as jnp
from jax import lax
from jax.experimental import pallas as pl
from jax.experimental.pallas import tpu as pltpu

BN_EPS = 1e-5
LEAKY_SLOPE = 0.01  # nn.LeakyReLU() default


def _conv_stats_kernel(x_ref, w_ref, b_ref, mask_ref, y_ref, stats_ref, *,
                       ks, wp, lout):
    # x_ref:     (1, Cin, Lin)      flattened zero-padded image (+ tail pad)
    # w_ref:     (ks*ks, Cout, Cin) per-tap weight matrices
    # b_ref:     (Cout, 1)          conv bias
    # mask_ref:  (1, Lout)          1.0 where the "wide" column is a real pixel
    # y_ref:     (1, Cout, Lout)    pre-BN conv output (wide rows of width Wp)
    # stats_ref: (1, Cout, 2)       per-image [sum, sum_of_squares] per channel
    cout = w_ref.shape[1]
    acc = jnp.zeros((cout, lout), dtype=jnp.float32)
    for t in range(ks * ks):
        dy, dx = t // ks, t % ks
        s = dy * wp + dx
        xs = x_ref[0, :, s:s + lout]                       # (Cin, Lout)
        acc = acc + jnp.dot(w_ref[t], xs,
                            preferred_element_type=jnp.float32)
    y = acc + b_ref[...]                                   # bias, bcast lanes
    y_ref[0] = y

    m = mask_ref[...]                                      # (1, Lout)
    ym = y * m                                             # zero garbage cols
    s0 = jnp.sum(ym, axis=1, keepdims=True)                # (Cout, 1)
    s1 = jnp.sum(ym * ym, axis=1, keepdims=True)           # (Cout, 1)
    stats_ref[0] = jnp.concatenate([s0, s1], axis=1)       # (Cout, 2)


def _bn_act_kernel(y_ref, ss_ref, o_ref):
    # y_ref: (1, Cout, Lout); ss_ref: (Cout, 2) [scale, shift]; o_ref like y_ref
    y = y_ref[0]
    scale = ss_ref[:, 0:1]
    shift = ss_ref[:, 1:2]
    z = y * scale + shift
    o_ref[0] = jnp.where(z >= 0.0, z, LEAKY_SLOPE * z)


def no_conditioning_block_v1(feature_map, conv_w, conv_b, bn_gamma, bn_beta, ks):
    """feature_map: (N, Cin, H, W) NCHW f32.  Returns (N, Cout, H, W) f32."""
    n, c_in, h, w = feature_map.shape
    c_out = conv_w.shape[0]
    pd = ks // 2
    hp, wp = h + 2 * pd, w + 2 * pd
    lout = h * wp                     # "wide" output row length (width Wp)
    lin = hp * wp + 2 * pd            # + tail zeros so the last tap slice fits

    x = feature_map.astype(jnp.float32)
    xpad = jnp.pad(x, ((0, 0), (0, 0), (pd, pd), (pd, pd)))
    xflat = xpad.reshape(n, c_in, hp * wp)
    xflat = jnp.pad(xflat, ((0, 0), (0, 0), (0, 2 * pd)))  # (N, Cin, Lin)

    # Per-tap weight matrices: w_taps[dy*ks+dx] = conv_w[:, :, dy, dx] (Cout,Cin)
    w_taps = jnp.transpose(conv_w.astype(jnp.float32),
                           (2, 3, 0, 1)).reshape(ks * ks, c_out, c_in)
    bias = conv_b.astype(jnp.float32).reshape(c_out, 1)

    # Validity mask for wide columns: column f = h_out*Wp + w_out is real iff w_out < W.
    mask = ((jnp.arange(lout) % wp) < w).astype(jnp.float32).reshape(1, lout)

    cparams = pltpu.CompilerParams(dimension_semantics=("parallel",),
                                   vmem_limit_bytes=32 * 1024 * 1024)

    flops = 2 * n * c_out * c_in * ks * ks * lout
    bytes_accessed = 4 * (n * c_in * lin + ks * ks * c_out * c_in + c_out
                          + lout + n * c_out * lout + n * c_out * 2)

    # -------- pass 1: conv + bias, per-image channel sums / sums-of-squares --
    y_wide, stats = pl.pallas_call(
        functools.partial(_conv_stats_kernel, ks=ks, wp=wp, lout=lout),
        out_shape=(jax.ShapeDtypeStruct((n, c_out, lout), jnp.float32),
                   jax.ShapeDtypeStruct((n, c_out, 2), jnp.float32)),
        grid=(n,),
        in_specs=[
            pl.BlockSpec((1, c_in, lin), lambda i: (i, 0, 0)),
            pl.BlockSpec((ks * ks, c_out, c_in), lambda i: (0, 0, 0)),
            pl.BlockSpec((c_out, 1), lambda i: (0, 0)),
            pl.BlockSpec((1, lout), lambda i: (0, 0)),
        ],
        out_specs=(
            pl.BlockSpec((1, c_out, lout), lambda i: (i, 0, 0)),
            pl.BlockSpec((1, c_out, 2), lambda i: (i, 0, 0)),
        ),
        compiler_params=cparams,
        cost_estimate=pl.CostEstimate(flops=flops, transcendentals=0,
                                      bytes_accessed=bytes_accessed),
    )(xflat, w_taps, bias, mask)

    # -------- finalize batch statistics (tiny, done in plain XLA) ------------
    count = jnp.float32(n * h * w)
    ssum = jnp.sum(stats[:, :, 0], axis=0)                 # (Cout,)
    ssq = jnp.sum(stats[:, :, 1], axis=0)                  # (Cout,)
    mean = ssum / count
    var = jnp.maximum(ssq / count - mean * mean, 0.0)      # biased variance
    inv = lax.rsqrt(var + BN_EPS)
    scale = bn_gamma.astype(jnp.float32) * inv
    shift = bn_beta.astype(jnp.float32) - mean * scale
    scale_shift = jnp.stack([scale, shift], axis=1)        # (Cout, 2)

    # -------- pass 2: normalize + affine + LeakyReLU --------------------------
    out_wide = pl.pallas_call(
        _bn_act_kernel,
        out_shape=jax.ShapeDtypeStruct((n, c_out, lout), jnp.float32),
        grid=(n,),
        in_specs=[
            pl.BlockSpec((1, c_out, lout), lambda i: (i, 0, 0)),
            pl.BlockSpec((c_out, 2), lambda i: (0, 0)),
        ],
        out_specs=pl.BlockSpec((1, c_out, lout), lambda i: (i, 0, 0)),
        compiler_params=cparams,
    )(y_wide, scale_shift)

    # (N, Cout, H*Wp) -> (N, Cout, H, Wp) -> crop the pad-width columns -> NCHW.
    return out_wide.reshape(n, c_out, h, wp)[:, :, :, :w]


def _reference(x, conv_w, conv_b, gamma, beta, ks):
    pd = ks // 2
    y = lax.conv_general_dilated(x, conv_w, window_strides=(1, 1),
                                 padding=[(pd, pd), (pd, pd)],
                                 dimension_numbers=("NCHW", "OIHW", "NCHW"))
    y = y + conv_b.reshape(1, -1, 1, 1)
    mean = jnp.mean(y, axis=(0, 2, 3), keepdims=True)
    var = jnp.mean((y - mean) ** 2, axis=(0, 2, 3), keepdims=True)
    y = (y - mean) * lax.rsqrt(var + BN_EPS)
    y = y * gamma.reshape(1, -1, 1, 1) + beta.reshape(1, -1, 1, 1)
    return jnp.where(y >= 0.0, y, LEAKY_SLOPE * y)


if __name__ == "__main__":
    # Small, deterministic config consistent with the module's __init__.
    N, C_IN, C_OUT, H, W, KS = 2, 4, 8, 16, 16, 3

    key = jax.random.PRNGKey(0)
    kx, kw, kb, kg, kbeta = jax.random.split(key, 5)

    x = jax.random.normal(kx, (N, C_IN, H, W), dtype=jnp.float32)
    conv_w = 0.1 * jax.random.normal(kw, (C_OUT, C_IN, KS, KS), dtype=jnp.float32)
    conv_b = 0.1 * jax.random.normal(kb, (C_OUT,), dtype=jnp.float32)
    bn_gamma = 1.0 + 0.05 * jax.random.normal(kg, (C_OUT,), dtype=jnp.float32)
    bn_beta = 0.05 * jax.random.normal(kbeta, (C_OUT,), dtype=jnp.float32)

    out = no_conditioning_block_v1(x, conv_w, conv_b, bn_gamma, bn_beta, KS)
    out = jax.block_until_ready(out)

    assert out.shape == (N, C_OUT, H, W)
    assert out.dtype == jnp.float32

    ref = jax.block_until_ready(_reference(x, conv_w, conv_b, bn_gamma, bn_beta, KS))
    assert jnp.allclose(out, ref, atol=2e-3, rtol=2e-3), \
        float(jnp.max(jnp.abs(out - ref)))

    print("KERNEL_OK")
</pallas_src>

<mosaic_0001>
module attributes {stable_mosaic.version = 11 : i64} {
  func.func @_conv_stats_kernel(%arg0: i32, %arg1: memref<1x4x326xf32, #tpu.memory_space<vmem>>, %arg2: memref<9x8x4xf32, #tpu.memory_space<vmem>>, %arg3: memref<8x1xf32, #tpu.memory_space<vmem>>, %arg4: memref<1x288xf32, #tpu.memory_space<vmem>>, %arg5: memref<1x8x288xf32, #tpu.memory_space<vmem>>, %arg6: memref<1x8x2xf32, #tpu.memory_space<vmem>>) attributes {dimension_semantics = [#tpu.dimension_semantics<parallel>], iteration_bounds = array<i64: 2>, scalar_prefetch = 0 : i64, scratch_operands = 0 : i64, tpu.core_type = #tpu.core_type<tc>, window_params = [{transform_indices = @transform_0, window_bounds = array<i64: 1, 4, 326>}, {pipeline_mode = #tpu.pipeline_mode<synchronous>, transform_indices = @transform_1, window_bounds = array<i64: 9, 8, 4>}, {pipeline_mode = #tpu.pipeline_mode<synchronous>, transform_indices = @transform_2, window_bounds = array<i64: 8, 1>}, {pipeline_mode = #tpu.pipeline_mode<synchronous>, transform_indices = @transform_3, window_bounds = array<i64: 1, 288>}, {transform_indices = @transform_4, window_bounds = array<i64: 1, 8, 288>}, {transform_indices = @transform_5, window_bounds = array<i64: 1, 8, 2>}]} {
    %cst = arith.constant 0.000000e+00 : f32
    %0 = vector.broadcast %cst : f32 to vector<8x288xf32>
    %c0 = arith.constant 0 : index
    %c0_0 = arith.constant 0 : index
    %c0_1 = arith.constant 0 : index
    %1 = vector.load %arg1[%c0, %c0_0, %c0_1] : memref<1x4x326xf32, #tpu.memory_space<vmem>>, vector<1x4x288xf32>
    %2 = vector.shape_cast %1 : vector<1x4x288xf32> to vector<4x288xf32>
    %c0_2 = arith.constant 0 : index
    %c0_3 = arith.constant 0 : index
    %c0_4 = arith.constant 0 : index
    %3 = vector.load %arg2[%c0_2, %c0_3, %c0_4] : memref<9x8x4xf32, #tpu.memory_space<vmem>>, vector<1x8x4xf32>
    %4 = vector.shape_cast %3 : vector<1x8x4xf32> to vector<8x4xf32>
    %cst_5 = arith.constant dense<0.000000e+00> : vector<8x288xf32>
    %5 = tpu.matmul %4, %2, %cst_5 {dimension_numbers = #tpu.dot_dimension_numbers<[1], [0], [0], [1], [0, 0, 1, 1], [], []>} : vector<8x4xf32>, vector<4x288xf32>, vector<8x288xf32> -> vector<8x288xf32>
    %6 = arith.addf %0, %5 : vector<8x288xf32>
    %c0_6 = arith.constant 0 : index
    %c0_7 = arith.constant 0 : index
    %c1 = arith.constant 1 : index
    %7 = vector.load %arg1[%c0_6, %c0_7, %c1] : memref<1x4x326xf32, #tpu.memory_space<vmem>>, vector<1x4x288xf32>
    %8 = vector.shape_cast %7 : vector<1x4x288xf32> to vector<4x288xf32>
    %c1_8 = arith.constant 1 : index
    %c0_9 = arith.constant 0 : index
    %c0_10 = arith.constant 0 : index
    %9 = vector.load %arg2[%c1_8, %c0_9, %c0_10] : memref<9x8x4xf32, #tpu.memory_space<vmem>>, vector<1x8x4xf32>
    %10 = vector.shape_cast %9 : vector<1x8x4xf32> to vector<8x4xf32>
    %cst_11 = arith.constant dense<0.000000e+00> : vector<8x288xf32>
    %11 = tpu.matmul %10, %8, %cst_11 {dimension_numbers = #tpu.dot_dimension_numbers<[1], [0], [0], [1], [0, 0, 1, 1], [], []>} : vector<8x4xf32>, vector<4x288xf32>, vector<8x288xf32> -> vector<8x288xf32>
    %12 = arith.addf %6, %11 : vector<8x288xf32>
    %c0_12 = arith.constant 0 : index
    %c0_13 = arith.constant 0 : index
    %c2 = arith.constant 2 : index
    %13 = vector.load %arg1[%c0_12, %c0_13, %c2] : memref<1x4x326xf32, #tpu.memory_space<vmem>>, vector<1x4x288xf32>
    %14 = vector.shape_cast %13 : vector<1x4x288xf32> to vector<4x288xf32>
    %c2_14 = arith.constant 2 : index
    %c0_15 = arith.constant 0 : index
    %c0_16 = arith.constant 0 : index
    %15 = vector.load %arg2[%c2_14, %c0_15, %c0_16] : memref<9x8x4xf32, #tpu.memory_space<vmem>>, vector<1x8x4xf32>
    %16 = vector.shape_cast %15 : vector<1x8x4xf32> to vector<8x4xf32>
    %cst_17 = arith.constant dense<0.000000e+00> : vector<8x288xf32>
    %17 = tpu.matmul %16, %14, %cst_17 {dimension_numbers = #tpu.dot_dimension_numbers<[1], [0], [0], [1], [0, 0, 1, 1], [], []>} : vector<8x4xf32>, vector<4x288xf32>, vector<8x288xf32> -> vector<8x288xf32>
    %18 = arith.addf %12, %17 : vector<8x288xf32>
    %c0_18 = arith.constant 0 : index
    %c0_19 = arith.constant 0 : index
    %c18 = arith.constant 18 : index
    %19 = vector.load %arg1[%c0_18, %c0_19, %c18] : memref<1x4x326xf32, #tpu.memory_space<vmem>>, vector<1x4x288xf32>
    %20 = vector.shape_cast %19 : vector<1x4x288xf32> to vector<4x288xf32>
    %c3 = arith.constant 3 : index
    %c0_20 = arith.constant 0 : index
    %c0_21 = arith.constant 0 : index
    %21 = vector.load %arg2[%c3, %c0_20, %c0_21] : memref<9x8x4xf32, #tpu.memory_space<vmem>>, vector<1x8x4xf32>
    %22 = vector.shape_cast %21 : vector<1x8x4xf32> to vector<8x4xf32>
    %cst_22 = arith.constant dense<0.000000e+00> : vector<8x288xf32>
    %23 = tpu.matmul %22, %20, %cst_22 {dimension_numbers = #tpu.dot_dimension_numbers<[1], [0], [0], [1], [0, 0, 1, 1], [], []>} : vector<8x4xf32>, vector<4x288xf32>, vector<8x288xf32> -> vector<8x288xf32>
    %24 = arith.addf %18, %23 : vector<8x288xf32>
    %c0_23 = arith.constant 0 : index
    %c0_24 = arith.constant 0 : index
    %c19 = arith.constant 19 : index
    %25 = vector.load %arg1[%c0_23, %c0_24, %c19] : memref<1x4x326xf32, #tpu.memory_space<vmem>>, vector<1x4x288xf32>
    %26 = vector.shape_cast %25 : vector<1x4x288xf32> to vector<4x288xf32>
    %c4 = arith.constant 4 : index
    %c0_25 = arith.constant 0 : index
    %c0_26 = arith.constant 0 : index
    %27 = vector.load %arg2[%c4, %c0_25, %c0_26] : memref<9x8x4xf32, #tpu.memory_space<vmem>>, vector<1x8x4xf32>
    %28 = vector.shape_cast %27 : vector<1x8x4xf32> to vector<8x4xf32>
    %cst_27 = arith.constant dense<0.000000e+00> : vector<8x288xf32>
    %29 = tpu.matmul %28, %26, %cst_27 {dimension_numbers = #tpu.dot_dimension_numbers<[1], [0], [0], [1], [0, 0, 1, 1], [], []>} : vector<8x4xf32>, vector<4x288xf32>, vector<8x288xf32> -> vector<8x288xf32>
    %30 = arith.addf %24, %29 : vector<8x288xf32>
    %c0_28 = arith.constant 0 : index
    %c0_29 = arith.constant 0 : index
    %c20 = arith.constant 20 : index
    %31 = vector.load %arg1[%c0_28, %c0_29, %c20] : memref<1x4x326xf32, #tpu.memory_space<vmem>>, vector<1x4x288xf32>
    %32 = vector.shape_cast %31 : vector<1x4x288xf32> to vector<4x288xf32>
    %c5 = arith.constant 5 : index
    %c0_30 = arith.constant 0 : index
    %c0_31 = arith.constant 0 : index
    %33 = vector.load %arg2[%c5, %c0_30, %c0_31] : memref<9x8x4xf32, #tpu.memory_space<vmem>>, vector<1x8x4xf32>
    %34 = vector.shape_cast %33 : vector<1x8x4xf32> to vector<8x4xf32>
    %cst_32 = arith.constant dense<0.000000e+00> : vector<8x288xf32>
    %35 = tpu.matmul %34, %32, %cst_32 {dimension_numbers = #tpu.dot_dimension_numbers<[1], [0], [0], [1], [0, 0, 1, 1], [], []>} : vector<8x4xf32>, vector<4x288xf32>, vector<8x288xf32> -> vector<8x288xf32>
    %36 = arith.addf %30, %35 : vector<8x288xf32>
    %c0_33 = arith.constant 0 : index
    %c0_34 = arith.constant 0 : index
    %c36 = arith.constant 36 : index
    %37 = vector.load %arg1[%c0_33, %c0_34, %c36] : memref<1x4x326xf32, #tpu.memory_space<vmem>>, vector<1x4x288xf32>
    %38 = vector.shape_cast %37 : vector<1x4x288xf32> to vector<4x288xf32>
    %c6 = arith.constant 6 : index
    %c0_35 = arith.constant 0 : index
    %c0_36 = arith.constant 0 : index
    %39 = vector.load %arg2[%c6, %c0_35, %c0_36] : memref<9x8x4xf32, #tpu.memory_space<vmem>>, vector<1x8x4xf32>
    %40 = vector.shape_cast %39 : vector<1x8x4xf32> to vector<8x4xf32>
    %cst_37 = arith.constant dense<0.000000e+00> : vector<8x288xf32>
    %41 = tpu.matmul %40, %38, %cst_37 {dimension_numbers = #tpu.dot_dimension_numbers<[1], [0], [0], [1], [0, 0, 1, 1], [], []>} : vector<8x4xf32>, vector<4x288xf32>, vector<8x288xf32> -> vector<8x288xf32>
    %42 = arith.addf %36, %41 : vector<8x288xf32>
    %c0_38 = arith.constant 0 : index
    %c0_39 = arith.constant 0 : index
    %c37 = arith.constant 37 : index
    %43 = vector.load %arg1[%c0_38, %c0_39, %c37] : memref<1x4x326xf32, #tpu.memory_space<vmem>>, vector<1x4x288xf32>
    %44 = vector.shape_cast %43 : vector<1x4x288xf32> to vector<4x288xf32>
    %c7 = arith.constant 7 : index
    %c0_40 = arith.constant 0 : index
    %c0_41 = arith.constant 0 : index
    %45 = vector.load %arg2[%c7, %c0_40, %c0_41] : memref<9x8x4xf32, #tpu.memory_space<vmem>>, vector<1x8x4xf32>
    %46 = vector.shape_cast %45 : vector<1x8x4xf32> to vector<8x4xf32>
    %cst_42 = arith.constant dense<0.000000e+00> : vector<8x288xf32>
    %47 = tpu.matmul %46, %44, %cst_42 {dimension_numbers = #tpu.dot_dimension_numbers<[1], [0], [0], [1], [0, 0, 1, 1], [], []>} : vector<8x4xf32>, vector<4x288xf32>, vector<8x288xf32> -> vector<8x288xf32>
    %48 = arith.addf %42, %47 : vector<8x288xf32>
    %c0_43 = arith.constant 0 : index
    %c0_44 = arith.constant 0 : index
    %c38 = arith.constant 38 : index
    %49 = vector.load %arg1[%c0_43, %c0_44, %c38] : memref<1x4x326xf32, #tpu.memory_space<vmem>>, vector<1x4x288xf32>
    %50 = vector.shape_cast %49 : vector<1x4x288xf32> to vector<4x288xf32>
    %c8 = arith.constant 8 : index
    %c0_45 = arith.constant 0 : index
    %c0_46 = arith.constant 0 : index
    %51 = vector.load %arg2[%c8, %c0_45, %c0_46] : memref<9x8x4xf32, #tpu.memory_space<vmem>>, vector<1x8x4xf32>
    %52 = vector.shape_cast %51 : vector<1x8x4xf32> to vector<8x4xf32>
    %cst_47 = arith.constant dense<0.000000e+00> : vector<8x288xf32>
    %53 = tpu.matmul %52, %50, %cst_47 {dimension_numbers = #tpu.dot_dimension_numbers<[1], [0], [0], [1], [0, 0, 1, 1], [], []>} : vector<8x4xf32>, vector<4x288xf32>, vector<8x288xf32> -> vector<8x288xf32>
    %54 = arith.addf %48, %53 : vector<8x288xf32>
    %c0_48 = arith.constant 0 : index
    %c0_49 = arith.constant 0 : index
    %55 = vector.load %arg3[%c0_48, %c0_49] : memref<8x1xf32, #tpu.memory_space<vmem>>, vector<8x1xf32>
    %56 = vector.broadcast %55 : vector<8x1xf32> to vector<8x288xf32>
    %57 = arith.addf %54, %56 : vector<8x288xf32>
    %c0_50 = arith.constant 0 : index
    %c0_51 = arith.constant 0 : index
    %c0_52 = arith.constant 0 : index
    %58 = vector.load %arg5[%c0_50, %c0_51, %c0_52] : memref<1x8x288xf32, #tpu.memory_space<vmem>>, vector<1x8x288xf32>
    %59 = vector.shape_cast %58 : vector<1x8x288xf32> to vector<8x288xf32>
    %60 = vector.shape_cast %57 : vector<8x288xf32> to vector<1x8x288xf32>
    tpu.vector_store %arg5[%c0_50, %c0_51, %c0_52], %60 {strides = array<i32>} : memref<1x8x288xf32, #tpu.memory_space<vmem>>, vector<1x8x288xf32>,
    %c0_53 = arith.constant 0 : index
    %c0_54 = arith.constant 0 : index
    %61 = vector.load %arg4[%c0_53, %c0_54] : memref<1x288xf32, #tpu.memory_space<vmem>>, vector<1x288xf32>
    %62 = vector.broadcast %61 : vector<1x288xf32> to vector<8x288xf32>
    %63 = arith.mulf %57, %62 : vector<8x288xf32>
    %cst_55 = arith.constant dense<0.000000e+00> : vector<8xf32>
    %64 = vector.multi_reduction <add>, %63, %cst_55 [1] : vector<8x288xf32> to vector<8xf32>
    %65 = vector.shape_cast %64 : vector<8xf32> to vector<8x1xf32>
    %66 = arith.mulf %63, %63 : vector<8x288xf32>
    %cst_56 = arith.constant dense<0.000000e+00> : vector<8xf32>
    %67 = vector.multi_reduction <add>, %66, %cst_56 [1] : vector<8x288xf32> to vector<8xf32>
    %68 = vector.shape_cast %67 : vector<8xf32> to vector<8x1xf32>
    %69 = tpu.concatenate %65, %68 in 1 : vector<8x1xf32>, vector<8x1xf32> -> vector<8x2xf32>
    %c0_57 = arith.constant 0 : index
    %c0_58 = arith.constant 0 : index
    %c0_59 = arith.constant 0 : index
    %70 = vector.load %arg6[%c0_57, %c0_58, %c0_59] : memref<1x8x2xf32, #tpu.memory_space<vmem>>, vector<1x8x2xf32>
    %71 = vector.shape_cast %70 : vector<1x8x2xf32> to vector<8x2xf32>
    %72 = vector.shape_cast %69 : vector<8x2xf32> to vector<1x8x2xf32>
    tpu.vector_store %arg6[%c0_57, %c0_58, %c0_59], %72 {strides = array<i32>} : memref<1x8x2xf32, #tpu.memory_space<vmem>>, vector<1x8x2xf32>,
    return
  }
  func.func @transform_0(%arg0: i32) -> (i32, i32, i32) {
    %c0_i32 = arith.constant 0 : i32
    %c0_i32_0 = arith.constant 0 : i32
    %c0_i32_1 = arith.constant 0 : i32
    return %arg0, %c0_i32, %c0_i32_0 : i32, i32, i32
  }
  func.func @transform_1(%arg0: i32) -> (i32, i32, i32) {
    %c0_i32 = arith.constant 0 : i32
    %c0_i32_0 = arith.constant 0 : i32
    %c0_i32_1 = arith.constant 0 : i32
    %c0_i32_2 = arith.constant 0 : i32
    return %c0_i32, %c0_i32_0, %c0_i32_1 : i32, i32, i32
  }
  func.func @transform_2(%arg0: i32) -> (i32, i32) {
    %c0_i32 = arith.constant 0 : i32
    %c0_i32_0 = arith.constant 0 : i32
    %c0_i32_1 = arith.constant 0 : i32
    return %c0_i32, %c0_i32_0 : i32, i32
  }
  func.func @transform_3(%arg0: i32) -> (i32, i32) {
    %c0_i32 = arith.constant 0 : i32
    %c0_i32_0 = arith.constant 0 : i32
    %c0_i32_1 = arith.constant 0 : i32
    return %c0_i32, %c0_i32_0 : i32, i32
  }
  func.func @transform_4(%arg0: i32) -> (i32, i32, i32) {
    %c0_i32 = arith.constant 0 : i32
    %c0_i32_0 = arith.constant 0 : i32
    %c0_i32_1 = arith.constant 0 : i32
    return %arg0, %c0_i32, %c0_i32_0 : i32, i32, i32
  }
  func.func @transform_5(%arg0: i32) -> (i32, i32, i32) {
    %c0_i32 = arith.constant 0 : i32
    %c0_i32_0 = arith.constant 0 : i32
    %c0_i32_1 = arith.constant 0 : i32
    return %arg0, %c0_i32, %c0_i32_0 : i32, i32, i32
  }
}

</mosaic_0001>

<llo_original>
// kernel: tpu_custom_call.1
$region0: #{tpu_custom_call.1}
  #allocation0 [shape = 'u32[]', space=smem, size = 0x4, offset = 0x4, fixed_abs, tag = 'smem constant byte address 0x4 - core index']
  #allocation1 [shape = 'u32[144,128]{1,0:T(1,128)}', space=vmem, size = 0x12000, scoped, tag = 'internal scratch']
  %s0 = inlined_call_operand.vmem [shape: f32[2,4,326], index: 0, kind: input, shape index: {}]
  %s1 = inlined_call_operand.vmem [shape: f32[9,8,4], index: 1, kind: input, shape index: {}]
  %s2 = inlined_call_operand.vmem [shape: f32[8,1], index: 2, kind: input, shape index: {}]
  %s3 = inlined_call_operand.vmem [shape: f32[1,288], index: 3, kind: input, shape index: {}]
  %s4 = inlined_call_operand.hbm [shape: f32[2,8,288], index: 4, kind: output, shape index: {0}]
  %s5 = inlined_call_operand.vmem [shape: f32[2,8,2], index: 5, kind: output, shape index: {1}]
  %6 = xla_tuple %s4, %s5
  %s7 = sld [smem:[#allocation0]]
  $region57: #{tpu_custom_call.1} parent=0
    _
  %s9 = ssub.s32 1, %s7
  %s10 = scalar_select 0, %s9, %s7
  $region1: #{tpu_custom_call.1} parent=0
    #allocation2 [shape = 'u8[24576]{0}', space=vmem, size = 0x6000, scoped, tag = 'output window, operand 0']
    #allocation3 [shape = 's32[2]{0}', space=sflag, size = 0x8, scoped, tag = 'scoped memory for tpu_custom_call.1']
    %11 = vsyncpa [#allocation3], 0
    %s12 = scalar_lea.sflag [#allocation3], 1
    %13 = vsyncpa %s12, 0
    loop: start=0, step=1, limit=4
    $region2: #{tpu_custom_call.1} parent=1 // loop_pre_header
      _
    $region3: #{tpu_custom_call.1} parent=1 // loop_header
      %s15 = sphi 0, %s19
      %p16 = scmp.ge.s32.totalorder %s15, 4
      %s25 = sphi 0, %s27
      %s28 = sphi 0, %s25
      %s29 = sphi 0, %s28
      %s45 = sphi 0, %s29
      %s49 = sphi 0, %s49
      %s51 = sphi 0, %s49
      %s52 = sphi 0, %s51
      %s66 = sphi 0, %s52
      %s70 = sphi 0, %s70
      %s72 = sphi 0, %s70
      %s73 = sphi 0, %s72
      %s87 = sphi 0, %s73
      %s91 = sphi 0, %s91
      %s93 = sphi 0, %s91
      %s94 = sphi 0, %s93
      %s108 = sphi 0, %s94
      %s114 = sphi 0, %s116
      %s117 = sphi 0, %s114
      %s118 = sphi 0, %s117
      %s134 = sphi 0, %s118
      %s140 = sphi 0, %s142
      %s143 = sphi 0, %s140
      %s144 = sphi 0, %s143
      %s160 = sphi 0, %s144
    $region4: #{tpu_custom_call.1} parent=1 // loop_header_branch
      %18 = sbr.rel (%p16) target = $region8
    $region5: #{tpu_custom_call.1} parent=1 // loop_body
      %s20 = ssub.s32 %s15, 1
      %s21 = ssub.s32 %s15, 2
      %s22 = sadd.s32 %s15, 1
      %s23 = ssub.s32 %s15, %s22
      %p24 = scmp.eq.s32.totalorder %s23, 0
      %s26 = sadd.s32 %s25, 1
      %s27 = scalar_select %p24, %s25, %s26
      %p30 = pneg %p24
      %p31 = scmp.eq.s32.totalorder %s15, 1
      %p32 = por %p30, %p31
      %p33 = scmp.ne.s32.totalorder %s25, %s28
      %p34 = scmp.eq.s32.totalorder %s15, 0
      %p35 = por %p33, %p34
      %p36 = scmp.ne.s32.totalorder %s25, %s28
      %p37 = scmp.eq.s32.totalorder %s20, 1
      %p38 = por %p36, %p37
      %p39 = scmp.ne.s32.totalorder %s28, %s29
      %p40 = scmp.eq.s32.totalorder %s20, 0
      %p41 = por %p39, %p40
      %p42 = scmp.ne.s32.totalorder %s28, %s29
      %p43 = scmp.eq.s32.totalorder %s21, 1
      %p44 = por %p42, %p43
      %p46 = scmp.ne.s32.totalorder %s29, %s45
      %p47 = scmp.eq.s32.totalorder %s21, 0
      %p48 = por %p46, %p47
      %s50 = sadd.s32 %s49, 1
      %p53 = scmp.eq.s32.totalorder %s15, 1
      %p54 = scmp.ne.s32.totalorder %s49, %s51
      %p55 = scmp.eq.s32.totalorder %s15, 0
      %p56 = por %p54, %p55
      %p57 = scmp.ne.s32.totalorder %s49, %s51
      %p58 = scmp.eq.s32.totalorder %s20, 1
      %p59 = por %p57, %p58
      %p60 = scmp.ne.s32.totalorder %s51, %s52
      %p61 = scmp.eq.s32.totalorder %s20, 0
      %p62 = por %p60, %p61
      %p63 = scmp.ne.s32.totalorder %s51, %s52
      %p64 = scmp.eq.s32.totalorder %s21, 1
      %p65 = por %p63, %p64
      %p67 = scmp.ne.s32.totalorder %s52, %s66
      %p68 = scmp.eq.s32.totalorder %s21, 0
      %p69 = por %p67, %p68
      %s71 = sadd.s32 %s70, 1
      %p74 = scmp.eq.s32.totalorder %s15, 1
      %p75 = scmp.ne.s32.totalorder %s70, %s72
      %p76 = scmp.eq.s32.totalorder %s15, 0
      %p77 = por %p75, %p76
      %p78 = scmp.ne.s32.totalorder %s70, %s72
      %p79 = scmp.eq.s32.totalorder %s20, 1
      %p80 = por %p78, %p79
      %p81 = scmp.ne.s32.totalorder %s72, %s73
      %p82 = scmp.eq.s32.totalorder %s20, 0
      %p83 = por %p81, %p82
      %p84 = scmp.ne.s32.totalorder %s72, %s73
      %p85 = scmp.eq.s32.totalorder %s21, 1
      %p86 = por %p84, %p85
      %p88 = scmp.ne.s32.totalorder %s73, %s87
      %p89 = scmp.eq.s32.totalorder %s21, 0
      %p90 = por %p88, %p89
      %s92 = sadd.s32 %s91, 1
      %p95 = scmp.eq.s32.totalorder %s15, 1
      %p96 = scmp.ne.s32.totalorder %s91, %s93
      %p97 = scmp.eq.s32.totalorder %s15, 0
      %p98 = por %p96, %p97
      %p99 = scmp.ne.s32.totalorder %s91, %s93
      %p100 = scmp.eq.s32.totalorder %s20, 1
      %p101 = por %p99, %p100
      %p102 = scmp.ne.s32.totalorder %s93, %s94
      %p103 = scmp.eq.s32.totalorder %s20, 0
      %p104 = por %p102, %p103
      %p105 = scmp.ne.s32.totalorder %s93, %s94
      %p106 = scmp.eq.s32.totalorder %s21, 1
      %p107 = por %p105, %p106
      %p109 = scmp.ne.s32.totalorder %s94, %s108
      %p110 = scmp.eq.s32.totalorder %s21, 0
      %p111 = por %p109, %p110
      %s112 = ssub.s32 %s15, %s22
      %p113 = scmp.eq.s32.totalorder %s112, 0
      %s115 = sadd.s32 %s114, 1
      %s116 = scalar_select %p113, %s114, %s115
      %p119 = pneg %p113
      %p120 = scmp.eq.s32.totalorder %s15, 1
      %p121 = por %p119, %p120
      %p122 = scmp.ne.s32.totalorder %s114, %s117
      %p123 = scmp.eq.s32.totalorder %s15, 0
      %p124 = por %p122, %p123
      %p125 = scmp.ne.s32.totalorder %s114, %s117
      %p126 = scmp.eq.s32.totalorder %s20, 1
      %p127 = por %p125, %p126
      %p128 = scmp.ne.s32.totalorder %s117, %s118
      %p129 = scmp.eq.s32.totalorder %s20, 0
      %p130 = por %p128, %p129
      %p131 = scmp.ne.s32.totalorder %s117, %s118
      %p132 = scmp.eq.s32.totalorder %s21, 1
      %p133 = por %p131, %p132
      %p135 = scmp.ne.s32.totalorder %s118, %s134
      %p136 = scmp.eq.s32.totalorder %s21, 0
      %p137 = por %p135, %p136
      %s138 = ssub.s32 %s15, %s22
      %p139 = scmp.eq.s32.totalorder %s138, 0
      %s141 = sadd.s32 %s140, 1
      %s142 = scalar_select %p139, %s140, %s141
      %p145 = pneg %p139
      %p146 = scmp.eq.s32.totalorder %s15, 1
      %p147 = por %p145, %p146
      %p148 = scmp.ne.s32.totalorder %s140, %s143
      %p149 = scmp.eq.s32.totalorder %s15, 0
      %p150 = por %p148, %p149
      %p151 = scmp.ne.s32.totalorder %s140, %s143
      %p152 = scmp.eq.s32.totalorder %s20, 1
      %p153 = por %p151, %p152
      %p154 = scmp.ne.s32.totalorder %s143, %s144
      %p155 = scmp.eq.s32.totalorder %s20, 0
      %p156 = por %p154, %p155
      %p157 = scmp.ne.s32.totalorder %s143, %s144
      %p158 = scmp.eq.s32.totalorder %s21, 1
      %p159 = por %p157, %p158
      %p161 = scmp.ne.s32.totalorder %s144, %s160
      %p162 = scmp.eq.s32.totalorder %s21, 0
      %p163 = por %p161, %p162
      %p164 = scmp.le.s32.totalorder 1, %s15
      %p165 = scmp.lt.s32.totalorder %s15, 3
      %p166 = pnand %p164, %p165
      %p167 = pneg %p166
      // Predicated region
      $region9: #{tpu_custom_call.1} parent=5 // pred_check
        _
      $region10: #{tpu_custom_call.1} parent=5 // pred_check_branch
        %169 = sbr.rel (%p166) target = $region12
      $region11: #{tpu_custom_call.1} parent=5 // pred_region
        %s170 = ssub.s32 %s15, 1
        // Predicated region
        $region13: #{tpu_custom_call.1} parent=11 // pred_check
          %p171 = pneg %p62
        $region14: #{tpu_custom_call.1} parent=11 // pred_check_branch
          %173 = sbr.rel (%p171) target = $region16
        $region15: #{tpu_custom_call.1} parent=11 // pred_region
          _
        $region16: #{tpu_custom_call.1} parent=11 // pred_fallthru
          _
        // Predicated region
        $region17: #{tpu_custom_call.1} parent=11 // pred_check
          %p174 = pneg %p83
        $region18: #{tpu_custom_call.1} parent=11 // pred_check_branch
          %176 = sbr.rel (%p174) target = $region20
        $region19: #{tpu_custom_call.1} parent=11 // pred_region
          _
        $region20: #{tpu_custom_call.1} parent=11 // pred_fallthru
          _
        // Predicated region
        $region21: #{tpu_custom_call.1} parent=11 // pred_check
          %p177 = pneg %p104
        $region22: #{tpu_custom_call.1} parent=11 // pred_check_branch
          %179 = sbr.rel (%p177) target = $region24
        $region23: #{tpu_custom_call.1} parent=11 // pred_region
          _
        $region24: #{tpu_custom_call.1} parent=11 // pred_fallthru
          _
      $region12: #{tpu_custom_call.1} parent=5 // pred_fallthru
        _
      %p180 = scmp.lt.s32.totalorder %s15, 2
      // Predicated region
      $region25: #{tpu_custom_call.1} parent=5 // pred_check
        %p181 = pneg %p180
      $region26: #{tpu_custom_call.1} parent=5 // pred_check_branch
        %183 = sbr.rel (%p181) target = $region28
      $region27: #{tpu_custom_call.1} parent=5 // pred_region
        // Predicated region
        $region29: #{tpu_custom_call.1} parent=27 // pred_check
          %p184 = pneg %p35
        $region30: #{tpu_custom_call.1} parent=27 // pred_check_branch
          %186 = sbr.rel (%p184) target = $region32
        $region31: #{tpu_custom_call.1} parent=27 // pred_region
          %p187 = scmp.lt.s32.totalorder %s15, 1
          %s188 = scalar_select %p187, %s15, 1
          %s189 = smul.addr %s188, 3
          %s190 = smul.addr %s189, 4
          %s191 = scalar_lea.vmem %s0, %s190
        $region32: #{tpu_custom_call.1} parent=27 // pred_fallthru
          _
      $region28: #{tpu_custom_call.1} parent=5 // pred_fallthru
        _
      %p192 = scmp.le.s32.totalorder 1, %s15
      %p193 = scmp.lt.s32.totalorder %s15, 3
      %p194 = pnand %p192, %p193
      %p195 = pneg %p194
      // Predicated region
      $region33: #{tpu_custom_call.1} parent=5 // pred_check
        _
      $region34: #{tpu_custom_call.1} parent=5 // pred_check_branch
        %197 = sbr.rel (%p194) target = $region36
      $region35: #{tpu_custom_call.1} parent=5 // pred_region
        %s198 = ssub.s32 %s15, 1
        %p199 = scmp.lt.s32.totalorder %s20, 1
        %s200 = scalar_select %p199, %s20, 1
        %s201 = smul.addr %s200, 3
        %s202 = smul.addr %s201, 4
        %s203 = scalar_lea.vmem %s0, %s202
        %p204 = pneg %p41
        %p205 = pneg %p38
        %p206 = pneg %p62
        %p207 = pneg %p59
        %p208 = pneg %p83
        %p209 = pneg %p80
        %p210 = pneg %p104
        %p211 = pneg %p101
        %p212 = pneg %p130
        %p213 = pneg %p127
        %s214 = sand.u32 %s117, 1
        %s215 = scalar_lea.sflag [#allocation3], %s214
        %s216 = sand.u32 %s117, 1
        %s217 = smul.addr %s216, 24
        %s218 = scalar_lea.vmem [#allocation2], %s217
        %p219 = pneg %p156
        %p220 = pneg %p153
        %p221 = scmp.lt.s32.totalorder %s20, 1
        %s222 = scalar_select %p221, %s20, 1
        %s223 = smul.addr %s222, 8
        %s224 = scalar_lea.vmem %s5, %s223
        %p225 = scmp.lt.s32.totalorder %s20, 1
        %s226 = scalar_select %p225, %s20, 1
        %s227 = smul.addr %s226, 3
        %s228 = smul.addr %s227, 4
        %s229 = scalar_lea.vmem %s0, %s228
        %p230 = scmp.lt.s32.totalorder %s20, 1
        %s231 = scalar_select %p230, %s20, 1
        %s232 = smul.addr %s231, 8
        %s233 = scalar_lea.vmem %s5, %s232
        %v234 = vld [vmem:[%s229] sm:$0xff]
        %v235 = vld [vmem:[%s229 + $0x8] sm:$0xf]
        %v236 = vld [vmem:[%s1] sm:$0xff]
        %s237 = scalar_lea.vmem %s1, 8
        %v238 = vld [vmem:[%s237] sm:$0xff]
        %v241 = vcombine.high %v234, %v234
        %242 = vrot.lane.b32.xlu0 %v234, 127
        %v243 = vpop.permute.xlu0 %242
        %244 = vrot.lane.b32.xlu0 %v241, 127
        %v245 = vpop.permute.xlu0 %244
        %246 = vrot.lane.b32.xlu0 %v235, 127
        %v247 = vpop.permute.xlu0 %246
        %vm248 = vcmask 1039360
        %v249 = vsel %vm248, %v243, %v245
        %v250 = vsel %vm248, %v245, %v247
        %vm251 = vcmask 31744
        %v253 = vsel %vm251, %v238, 0
        %vm255 = vcmask 1043456
        %v256 = vsel %vm255, %v249, 0
        %v258 = vsel %vm255, %v250, 0
        %v260 = vsel %vm255, %v247, 0
        %262 = vmatprep.subr.mxu0 %v258
        %263 = vmatpush1.msra.mxu0 %v256
        %264 = vmatprep.subr.mxu0 0.0
        %265 = vmatpush1.msra.mxu0 0.0
        %266 = vmatprep.subr.mxu0 0.0
        %267 = vmatpush1.msra.mxu0 0.0
        %268 = vmatprep.subr.mxu0 0.0
        %269 = vmatpush1.msra.mxu0 0.0
        %270 = vmatprep.subr.mxu0 0.0
        %271 = vmatpush1.msra.mxu0 0.0
        %272 = vmatprep.subr.mxu0 0.0
        %273 = vmatpush1.msra.mxu0 0.0
        %274 = vmatprep.subr.mxu0 0.0
        %275 = vmatpush1.msra.mxu0 0.0
        %276 = vmatprep.subr.mxu0 0.0
        %277 = vmatpush1.msra.mxu0 0.0
        %278 = vmatprep.subr.mxu0 0.0
        %279 = vmatpush1.msra.mxu0 0.0
        %280 = vmatprep.subr.mxu0 0.0
        %281 = vmatpush1.msra.mxu0 0.0
        %282 = vmatprep.subr.mxu0 0.0
        %283 = vmatpush1.msra.mxu0 0.0
        %284 = vmatprep.subr.mxu0 0.0
        %285 = vmatpush1.msra.mxu0 0.0
        %286 = vmatprep.subr.mxu0 0.0
        %287 = vmatpush1.msra.mxu0 0.0
        %288 = vmatprep.subr.mxu0 0.0
        %289 = vmatpush1.msra.mxu0 0.0
        %290 = vmatprep.subr.mxu0 0.0
        %291 = vmatpush1.msra.mxu0 0.0
        %292 = vmatprep.subr.mxu0 0.0
        %293 = vmatpush1.msra.mxu0 0.0
        %294 = vmatprep.subr.mxu0 0.0
        %295 = vmatpush1.msra.mxu0 0.0
        %296 = vmatprep.subr.mxu0 0.0
        %297 = vmatpush1.msra.mxu0 0.0
        %298 = vmatprep.subr.mxu0 0.0
        %299 = vmatpush1.msra.mxu0 0.0
        %300 = vmatprep.subr.mxu0 0.0
        %301 = vmatpush1.msra.mxu0 0.0
        %302 = vmatprep.subr.mxu0 0.0
        %303 = vmatpush1.msra.mxu0 0.0
        %304 = vmatprep.subr.mxu0 0.0
        %305 = vmatpush1.msra.mxu0 0.0
        %306 = vmatprep.subr.mxu0 0.0
        %307 = vmatpush1.msra.mxu0 0.0
        %308 = vmatprep.subr.mxu0 0.0
        %309 = vmatpush1.msra.mxu0 0.0
        %310 = vmatprep.subr.mxu0 0.0
        %311 = vmatpush1.msra.mxu0 0.0
        %312 = vmatprep.subr.mxu0 0.0
        %313 = vmatpush1.msra.mxu0 0.0
        %314 = vmatprep.subr.mxu0 0.0
        %315 = vmatpush1.msra.mxu0 0.0
        %316 = vmatprep.subr.mxu0 0.0
        %317 = vmatpush1.msra.mxu0 0.0
        %318 = vmatprep.subr.mxu0 0.0
        %319 = vmatpush1.msra.mxu0 0.0
        %320 = vmatprep.subr.mxu0 0.0
        %321 = vmatpush1.msra.mxu0 0.0
        %322 = vmatprep.subr.mxu0 0.0
        %323 = vmatpush1.msra.mxu0 0.0
        %324 = vmatprep.subr.mxu0 0.0
        %325 = vmatpush1.msra.mxu0 0.0
        %326 = vmatprep.mubr.f32.mxu0 0.0
        %327 = vmatmul.mubr.f32.gmra.mrb[0].mxu0 %v253
        %v328 = vpop.f32.mrb[0].mxu0
        %v329 = vadd.f32 0.0, %v328
        %v330 = vpop.f32.mrb[0].mxu0
        %v331 = vadd.f32 0.0, %v330
        %332 = vdwg.mxu0
        %333 = vmatprep.subr.mxu0 0.0
        %334 = vmatpush1.msra.mxu0 %v260
        %335 = vmatprep.subr.mxu0 0.0
        %336 = vmatpush1.msra.mxu0 0.0
        %337 = vmatprep.subr.mxu0 0.0
        %338 = vmatpush1.msra.mxu0 0.0
        %339 = vmatprep.subr.mxu0 0.0
        %340 = vmatpush1.msra.mxu0 0.0
        %341 = vmatprep.subr.mxu0 0.0
        %342 = vmatpush1.msra.mxu0 0.0
        %343 = vmatprep.subr.mxu0 0.0
        %344 = vmatpush1.msra.mxu0 0.0
        %345 = vmatprep.subr.mxu0 0.0
        %346 = vmatpush1.msra.mxu0 0.0
        %347 = vmatprep.subr.mxu0 0.0
        %348 = vmatpush1.msra.mxu0 0.0
        %349 = vmatprep.subr.mxu0 0.0
        %350 = vmatpush1.msra.mxu0 0.0
        %351 = vmatprep.subr.mxu0 0.0
        %352 = vmatpush1.msra.mxu0 0.0
        %353 = vmatprep.subr.mxu0 0.0
        %354 = vmatpush1.msra.mxu0 0.0
        %355 = vmatprep.subr.mxu0 0.0
        %356 = vmatpush1.msra.mxu0 0.0
        %357 = vmatprep.subr.mxu0 0.0
        %358 = vmatpush1.msra.mxu0 0.0
        %359 = vmatprep.subr.mxu0 0.0
        %360 = vmatpush1.msra.mxu0 0.0
        %361 = vmatprep.subr.mxu0 0.0
        %362 = vmatpush1.msra.mxu0 0.0
        %363 = vmatprep.subr.mxu0 0.0
        %364 = vmatpush1.msra.mxu0 0.0
        %365 = vmatprep.subr.mxu0 0.0
        %366 = vmatpush1.msra.mxu0 0.0
        %367 = vmatprep.subr.mxu0 0.0
        %368 = vmatpush1.msra.mxu0 0.0
        %369 = vmatprep.subr.mxu0 0.0
        %370 = vmatpush1.msra.mxu0 0.0
        %371 = vmatprep.subr.mxu0 0.0
        %372 = vmatpush1.msra.mxu0 0.0
        %373 = vmatprep.subr.mxu0 0.0
        %374 = vmatpush1.msra.mxu0 0.0
        %375 = vmatprep.subr.mxu0 0.0
        %376 = vmatpush1.msra.mxu0 0.0
        %377 = vmatprep.subr.mxu0 0.0
        %378 = vmatpush1.msra.mxu0 0.0
        %379 = vmatprep.subr.mxu0 0.0
        %380 = vmatpush1.msra.mxu0 0.0
        %381 = vmatprep.subr.mxu0 0.0
        %382 = vmatpush1.msra.mxu0 0.0
        %383 = vmatprep.subr.mxu0 0.0
        %384 = vmatpush1.msra.mxu0 0.0
        %385 = vmatprep.subr.mxu0 0.0
        %386 = vmatpush1.msra.mxu0 0.0
        %387 = vmatprep.subr.mxu0 0.0
        %388 = vmatpush1.msra.mxu0 0.0
        %389 = vmatprep.subr.mxu0 0.0
        %390 = vmatpush1.msra.mxu0 0.0
        %391 = vmatprep.subr.mxu0 0.0
        %392 = vmatpush1.msra.mxu0 0.0
        %393 = vmatprep.subr.mxu0 0.0
        %394 = vmatpush1.msra.mxu0 0.0
        %395 = vmatprep.subr.mxu0 0.0
        %396 = vmatpush1.msra.mxu0 0.0
        %397 = vmatprep.mubr.f32.mxu0 0.0
        %398 = vmatmul.mubr.f32.gmra.mrb[0].mxu0 %v253
        %v399 = vpop.f32.mrb[0].mxu0
        %v400 = vadd.f32 0.0, %v399
        %v401 = vpop.f32.mrb[0].mxu0
        %402 = vdwg.mxu0
        %v404 = vsel %vm251, %v236, 0
        %v406 = vsel %vm255, %v234, 0
        %v408 = vsel %vm255, %v241, 0
        %v410 = vsel %vm255, %v235, 0
        %412 = vmatprep.subr.mxu0 %v408
        %413 = vmatpush1.msra.mxu0 %v406
        %414 = vmatprep.subr.mxu0 0.0
        %415 = vmatpush1.msra.mxu0 0.0
        %416 = vmatprep.subr.mxu0 0.0
        %417 = vmatpush1.msra.mxu0 0.0
        %418 = vmatprep.subr.mxu0 0.0
        %419 = vmatpush1.msra.mxu0 0.0
        %420 = vmatprep.subr.mxu0 0.0
        %421 = vmatpush1.msra.mxu0 0.0
        %422 = vmatprep.subr.mxu0 0.0
        %423 = vmatpush1.msra.mxu0 0.0
        %424 = vmatprep.subr.mxu0 0.0
        %425 = vmatpush1.msra.mxu0 0.0
        %426 = vmatprep.subr.mxu0 0.0
        %427 = vmatpush1.msra.mxu0 0.0
        %428 = vmatprep.subr.mxu0 0.0
        %429 = vmatpush1.msra.mxu0 0.0
        %430 = vmatprep.subr.mxu0 0.0
        %431 = vmatpush1.msra.mxu0 0.0
        %432 = vmatprep.subr.mxu0 0.0
        %433 = vmatpush1.msra.mxu0 0.0
        %434 = vmatprep.subr.mxu0 0.0
        %435 = vmatpush1.msra.mxu0 0.0
        %436 = vmatprep.subr.mxu0 0.0
        %437 = vmatpush1.msra.mxu0 0.0
        %438 = vmatprep.subr.mxu0 0.0
        %439 = vmatpush1.msra.mxu0 0.0
        %440 = vmatprep.subr.mxu0 0.0
        %441 = vmatpush1.msra.mxu0 0.0
        %442 = vmatprep.subr.mxu0 0.0
        %443 = vmatpush1.msra.mxu0 0.0
        %444 = vmatprep.subr.mxu0 0.0
        %445 = vmatpush1.msra.mxu0 0.0
        %446 = vmatprep.subr.mxu0 0.0
        %447 = vmatpush1.msra.mxu0 0.0
        %448 = vmatprep.subr.mxu0 0.0
        %449 = vmatpush1.msra.mxu0 0.0
        %450 = vmatprep.subr.mxu0 0.0
        %451 = vmatpush1.msra.mxu0 0.0
        %452 = vmatprep.subr.mxu0 0.0
        %453 = vmatpush1.msra.mxu0 0.0
        %454 = vmatprep.subr.mxu0 0.0
        %455 = vmatpush1.msra.mxu0 0.0
        %456 = vmatprep.subr.mxu0 0.0
        %457 = vmatpush1.msra.mxu0 0.0
        %458 = vmatprep.subr.mxu0 0.0
        %459 = vmatpush1.msra.mxu0 0.0
        %460 = vmatprep.subr.mxu0 0.0
        %461 = vmatpush1.msra.mxu0 0.0
        %462 = vmatprep.subr.mxu0 0.0
        %463 = vmatpush1.msra.mxu0 0.0
        %464 = vmatprep.subr.mxu0 0.0
        %465 = vmatpush1.msra.mxu0 0.0
        %466 = vmatprep.subr.mxu0 0.0
        %467 = vmatpush1.msra.mxu0 0.0
        %468 = vmatprep.subr.mxu0 0.0
        %469 = vmatpush1.msra.mxu0 0.0
        %470 = vmatprep.subr.mxu0 0.0
        %471 = vmatpush1.msra.mxu0 0.0
        %472 = vmatprep.subr.mxu0 0.0
        %473 = vmatpush1.msra.mxu0 0.0
        %474 = vmatprep.subr.mxu0 0.0
        %475 = vmatpush1.msra.mxu0 0.0
        %476 = vmatprep.mubr.f32.mxu0 0.0
        %477 = vmatmul.mubr.f32.gmra.mrb[0].mxu0 %v404
        %v478 = vpop.f32.mrb[0].mxu0
        %v479 = vadd.f32 %v329, %v478
        %v480 = vpop.f32.mrb[0].mxu0
        %v481 = vadd.f32 %v331, %v480
        %482 = vdwg.mxu0
        %483 = vmatprep.subr.mxu0 0.0
        %484 = vmatpush1.msra.mxu0 %v410
        %485 = vmatprep.subr.mxu0 0.0
        %486 = vmatpush1.msra.mxu0 0.0
        %487 = vmatprep.subr.mxu0 0.0
        %488 = vmatpush1.msra.mxu0 0.0
        %489 = vmatprep.subr.mxu0 0.0
        %490 = vmatpush1.msra.mxu0 0.0
        %491 = vmatprep.subr.mxu0 0.0
        %492 = vmatpush1.msra.mxu0 0.0
        %493 = vmatprep.subr.mxu0 0.0
        %494 = vmatpush1.msra.mxu0 0.0
        %495 = vmatprep.subr.mxu0 0.0
        %496 = vmatpush1.msra.mxu0 0.0
        %497 = vmatprep.subr.mxu0 0.0
        %498 = vmatpush1.msra.mxu0 0.0
        %499 = vmatprep.subr.mxu0 0.0
        %500 = vmatpush1.msra.mxu0 0.0
        %501 = vmatprep.subr.mxu0 0.0
        %502 = vmatpush1.msra.mxu0 0.0
        %503 = vmatprep.subr.mxu0 0.0
        %504 = vmatpush1.msra.mxu0 0.0
        %505 = vmatprep.subr.mxu0 0.0
        %506 = vmatpush1.msra.mxu0 0.0
        %507 = vmatprep.subr.mxu0 0.0
        %508 = vmatpush1.msra.mxu0 0.0
        %509 = vmatprep.subr.mxu0 0.0
        %510 = vmatpush1.msra.mxu0 0.0
        %511 = vmatprep.subr.mxu0 0.0
        %512 = vmatpush1.msra.mxu0 0.0
        %513 = vmatprep.subr.mxu0 0.0
        %514 = vmatpush1.msra.mxu0 0.0
        %515 = vmatprep.subr.mxu0 0.0
        %516 = vmatpush1.msra.mxu0 0.0
        %517 = vmatprep.subr.mxu0 0.0
        %518 = vmatpush1.msra.mxu0 0.0
        %519 = vmatprep.subr.mxu0 0.0
        %520 = vmatpush1.msra.mxu0 0.0
        %521 = vmatprep.subr.mxu0 0.0
        %522 = vmatpush1.msra.mxu0 0.0
        %523 = vmatprep.subr.mxu0 0.0
        %524 = vmatpush1.msra.mxu0 0.0
        %525 = vmatprep.subr.mxu0 0.0
        %526 = vmatpush1.msra.mxu0 0.0
        %527 = vmatprep.subr.mxu0 0.0
        %528 = vmatpush1.msra.mxu0 0.0
        %529 = vmatprep.subr.mxu0 0.0
        %530 = vmatpush1.msra.mxu0 0.0
        %531 = vmatprep.subr.mxu0 0.0
        %532 = vmatpush1.msra.mxu0 0.0
        %533 = vmatprep.subr.mxu0 0.0
        %534 = vmatpush1.msra.mxu0 0.0
        %535 = vmatprep.subr.mxu0 0.0
        %536 = vmatpush1.msra.mxu0 0.0
        %537 = vmatprep.subr.mxu0 0.0
        %538 = vmatpush1.msra.mxu0 0.0
        %539 = vmatprep.subr.mxu0 0.0
        %540 = vmatpush1.msra.mxu0 0.0
        %541 = vmatprep.subr.mxu0 0.0
        %542 = vmatpush1.msra.mxu0 0.0
        %543 = vmatprep.subr.mxu0 0.0
        %544 = vmatpush1.msra.mxu0 0.0
        %545 = vmatprep.subr.mxu0 0.0
        %546 = vmatpush1.msra.mxu0 0.0
        %547 = vmatprep.mubr.f32.mxu0 0.0
        %548 = vmatmul.mubr.f32.gmra.mrb[0].mxu0 %v404
        %v549 = vpop.f32.mrb[0].mxu0
        %v550 = vadd.f32 %v400, %v549
        %v551 = vpop.f32.mrb[0].mxu0
        %552 = vdwg.mxu0
        %v553 = vld [vmem:[%s229] sm:$0xff]
        %v554 = vld [vmem:[%s229 + $0x8] sm:$0xf]
        %s555 = scalar_lea.vmem %s1, 16
        %v556 = vld [vmem:[%s555] sm:$0xff]
        %v559 = vcombine.high %v553, %v553
        %560 = vrot.lane.b32.xlu0 %v553, 126
        %v561 = vpop.permute.xlu0 %560
        %562 = vrot.lane.b32.xlu0 %v559, 126
        %v563 = vpop.permute.xlu0 %562
        %564 = vrot.lane.b32.xlu0 %v554, 126
        %v565 = vpop.permute.xlu0 %564
        %vm566 = vcmask 1031168
        %v567 = vsel %vm566, %v561, %v563
        %v568 = vsel %vm566, %v563, %v565
        %v570 = vsel %vm251, %v556, 0
        %v572 = vsel %vm255, %v567, 0
        %v574 = vsel %vm255, %v568, 0
        %v576 = vsel %vm255, %v565, 0
        %578 = vmatprep.subr.mxu0 %v574
        %579 = vmatpush1.msra.mxu0 %v572
        %580 = vmatprep.subr.mxu0 0.0
        %581 = vmatpush1.msra.mxu0 0.0
        %582 = vmatprep.subr.mxu0 0.0
        %583 = vmatpush1.msra.mxu0 0.0
        %584 = vmatprep.subr.mxu0 0.0
        %585 = vmatpush1.msra.mxu0 0.0
        %586 = vmatprep.subr.mxu0 0.0
        %587 = vmatpush1.msra.mxu0 0.0
        %588 = vmatprep.subr.mxu0 0.0
        %589 = vmatpush1.msra.mxu0 0.0
        %590 = vmatprep.subr.mxu0 0.0
        %591 = vmatpush1.msra.mxu0 0.0
        %592 = vmatprep.subr.mxu0 0.0
        %593 = vmatpush1.msra.mxu0 0.0
        %594 = vmatprep.subr.mxu0 0.0
        %595 = vmatpush1.msra.mxu0 0.0
        %596 = vmatprep.subr.mxu0 0.0
        %597 = vmatpush1.msra.mxu0 0.0
        %598 = vmatprep.subr.mxu0 0.0
        %599 = vmatpush1.msra.mxu0 0.0
        %600 = vmatprep.subr.mxu0 0.0
        %601 = vmatpush1.msra.mxu0 0.0
        %602 = vmatprep.subr.mxu0 0.0
        %603 = vmatpush1.msra.mxu0 0.0
        %604 = vmatprep.subr.mxu0 0.0
        %605 = vmatpush1.msra.mxu0 0.0
        %606 = vmatprep.subr.mxu0 0.0
        %607 = vmatpush1.msra.mxu0 0.0
        %608 = vmatprep.subr.mxu0 0.0
        %609 = vmatpush1.msra.mxu0 0.0
        %610 = vmatprep.subr.mxu0 0.0
        %611 = vmatpush1.msra.mxu0 0.0
        %612 = vmatprep.subr.mxu0 0.0
        %613 = vmatpush1.msra.mxu0 0.0
        %614 = vmatprep.subr.mxu0 0.0
        %615 = vmatpush1.msra.mxu0 0.0
        %616 = vmatprep.subr.mxu0 0.0
        %617 = vmatpush1.msra.mxu0 0.0
        %618 = vmatprep.subr.mxu0 0.0
        %619 = vmatpush1.msra.mxu0 0.0
        %620 = vmatprep.subr.mxu0 0.0
        %621 = vmatpush1.msra.mxu0 0.0
        %622 = vmatprep.subr.mxu0 0.0
        %623 = vmatpush1.msra.mxu0 0.0
        %624 = vmatprep.subr.mxu0 0.0
        %625 = vmatpush1.msra.mxu0 0.0
        %626 = vmatprep.subr.mxu0 0.0
        %627 = vmatpush1.msra.mxu0 0.0
        %628 = vmatprep.subr.mxu0 0.0
        %629 = vmatpush1.msra.mxu0 0.0
        %630 = vmatprep.subr.mxu0 0.0
        %631 = vmatpush1.msra.mxu0 0.0
        %632 = vmatprep.subr.mxu0 0.0
        %633 = vmatpush1.msra.mxu0 0.0
        %634 = vmatprep.subr.mxu0 0.0
        %635 = vmatpush1.msra.mxu0 0.0
        %636 = vmatprep.subr.mxu0 0.0
        %637 = vmatpush1.msra.mxu0 0.0
        %638 = vmatprep.subr.mxu0 0.0
        %639 = vmatpush1.msra.mxu0 0.0
        %640 = vmatprep.subr.mxu0 0.0
        %641 = vmatpush1.msra.mxu0 0.0
        %642 = vmatprep.mubr.f32.mxu0 0.0
        %643 = vmatmul.mubr.f32.gmra.mrb[0].mxu0 %v570
        %v644 = vpop.f32.mrb[0].mxu0
        %v645 = vadd.f32 0.0, %v644
        %v646 = vpop.f32.mrb[0].mxu0
        %v647 = vadd.f32 0.0, %v646
        %648 = vdwg.mxu0
        %649 = vmatprep.subr.mxu0 0.0
        %650 = vmatpush1.msra.mxu0 %v576
        %651 = vmatprep.subr.mxu0 0.0
        %652 = vmatpush1.msra.mxu0 0.0
        %653 = vmatprep.subr.mxu0 0.0
        %654 = vmatpush1.msra.mxu0 0.0
        %655 = vmatprep.subr.mxu0 0.0
        %656 = vmatpush1.msra.mxu0 0.0
        %657 = vmatprep.subr.mxu0 0.0
        %658 = vmatpush1.msra.mxu0 0.0
        %659 = vmatprep.subr.mxu0 0.0
        %660 = vmatpush1.msra.mxu0 0.0
        %661 = vmatprep.subr.mxu0 0.0
        %662 = vmatpush1.msra.mxu0 0.0
        %663 = vmatprep.subr.mxu0 0.0
        %664 = vmatpush1.msra.mxu0 0.0
        %665 = vmatprep.subr.mxu0 0.0
        %666 = vmatpush1.msra.mxu0 0.0
        %667 = vmatprep.subr.mxu0 0.0
        %668 = vmatpush1.msra.mxu0 0.0
        %669 = vmatprep.subr.mxu0 0.0
        %670 = vmatpush1.msra.mxu0 0.0
        %671 = vmatprep.subr.mxu0 0.0
        %672 = vmatpush1.msra.mxu0 0.0
        %673 = vmatprep.subr.mxu0 0.0
        %674 = vmatpush1.msra.mxu0 0.0
        %675 = vmatprep.subr.mxu0 0.0
        %676 = vmatpush1.msra.mxu0 0.0
        %677 = vmatprep.subr.mxu0 0.0
        %678 = vmatpush1.msra.mxu0 0.0
        %679 = vmatprep.subr.mxu0 0.0
        %680 = vmatpush1.msra.mxu0 0.0
        %681 = vmatprep.subr.mxu0 0.0
        %682 = vmatpush1.msra.mxu0 0.0
        %683 = vmatprep.subr.mxu0 0.0
        %684 = vmatpush1.msra.mxu0 0.0
        %685 = vmatprep.subr.mxu0 0.0
        %686 = vmatpush1.msra.mxu0 0.0
        %687 = vmatprep.subr.mxu0 0.0
        %688 = vmatpush1.msra.mxu0 0.0
        %689 = vmatprep.subr.mxu0 0.0
        %690 = vmatpush1.msra.mxu0 0.0
        %691 = vmatprep.subr.mxu0 0.0
        %692 = vmatpush1.msra.mxu0 0.0
        %693 = vmatprep.subr.mxu0 0.0
        %694 = vmatpush1.msra.mxu0 0.0
        %695 = vmatprep.subr.mxu0 0.0
        %696 = vmatpush1.msra.mxu0 0.0
        %697 = vmatprep.subr.mxu0 0.0
        %698 = vmatpush1.msra.mxu0 0.0
        %699 = vmatprep.subr.mxu0 0.0
        %700 = vmatpush1.msra.mxu0 0.0
        %701 = vmatprep.subr.mxu0 0.0
        %702 = vmatpush1.msra.mxu0 0.0
        %703 = vmatprep.subr.mxu0 0.0
        %704 = vmatpush1.msra.mxu0 0.0
        %705 = vmatprep.subr.mxu0 0.0
        %706 = vmatpush1.msra.mxu0 0.0
        %707 = vmatprep.subr.mxu0 0.0
        %708 = vmatpush1.msra.mxu0 0.0
        %709 = vmatprep.subr.mxu0 0.0
        %710 = vmatpush1.msra.mxu0 0.0
        %711 = vmatprep.subr.mxu0 0.0
        %712 = vmatpush1.msra.mxu0 0.0
        %713 = vmatprep.mubr.f32.mxu0 0.0
        %714 = vmatmul.mubr.f32.gmra.mrb[0].mxu0 %v570
        %v715 = vpop.f32.mrb[0].mxu0
        %v716 = vadd.f32 0.0, %v715
        %v717 = vpop.f32.mrb[0].mxu0
        %718 = vdwg.mxu0
        %v719 = vadd.f32 %v479, %v645
        %v720 = vadd.f32 %v481, %v647
        %v721 = vadd.f32 %v550, %v716
        %v722 = vld [vmem:[%s229] sm:$0xff]
        %v723 = vld [vmem:[%s229 + $0x8] sm:$0xf]
        %s724 = scalar_lea.vmem %s1, 24
        %v725 = vld [vmem:[%s724] sm:$0xff]
        %v728 = vcombine.high %v722, %v722
        %729 = vrot.lane.b32.xlu0 %v722, 110
        %v730 = vpop.permute.xlu0 %729
        %731 = vrot.lane.b32.xlu0 %v728, 110
        %v732 = vpop.permute.xlu0 %731
        %733 = vrot.lane.b32.xlu0 %v723, 110
        %v734 = vpop.permute.xlu0 %733
        %vm735 = vcmask 900096
        %v736 = vsel %vm735, %v730, %v732
        %v737 = vsel %vm735, %v732, %v734
        %v739 = vsel %vm251, %v725, 0
        %v741 = vsel %vm255, %v736, 0
        %v743 = vsel %vm255, %v737, 0
        %v745 = vsel %vm255, %v734, 0
        %747 = vmatprep.subr.mxu0 %v743
        %748 = vmatpush1.msra.mxu0 %v741
        %749 = vmatprep.subr.mxu0 0.0
        %750 = vmatpush1.msra.mxu0 0.0
        %751 = vmatprep.subr.mxu0 0.0
        %752 = vmatpush1.msra.mxu0 0.0
        %753 = vmatprep.subr.mxu0 0.0
        %754 = vmatpush1.msra.mxu0 0.0
        %755 = vmatprep.subr.mxu0 0.0
        %756 = vmatpush1.msra.mxu0 0.0
        %757 = vmatprep.subr.mxu0 0.0
        %758 = vmatpush1.msra.mxu0 0.0
        %759 = vmatprep.subr.mxu0 0.0
        %760 = vmatpush1.msra.mxu0 0.0
        %761 = vmatprep.subr.mxu0 0.0
        %762 = vmatpush1.msra.mxu0 0.0
        %763 = vmatprep.subr.mxu0 0.0
        %764 = vmatpush1.msra.mxu0 0.0
        %765 = vmatprep.subr.mxu0 0.0
        %766 = vmatpush1.msra.mxu0 0.0
        %767 = vmatprep.subr.mxu0 0.0
        %768 = vmatpush1.msra.mxu0 0.0
        %769 = vmatprep.subr.mxu0 0.0
        %770 = vmatpush1.msra.mxu0 0.0
        %771 = vmatprep.subr.mxu0 0.0
        %772 = vmatpush1.msra.mxu0 0.0
        %773 = vmatprep.subr.mxu0 0.0
        %774 = vmatpush1.msra.mxu0 0.0
        %775 = vmatprep.subr.mxu0 0.0
        %776 = vmatpush1.msra.mxu0 0.0
        %777 = vmatprep.subr.mxu0 0.0
        %778 = vmatpush1.msra.mxu0 0.0
        %779 = vmatprep.subr.mxu0 0.0
        %780 = vmatpush1.msra.mxu0 0.0
        %781 = vmatprep.subr.mxu0 0.0
        %782 = vmatpush1.msra.mxu0 0.0
        %783 = vmatprep.subr.mxu0 0.0
        %784 = vmatpush1.msra.mxu0 0.0
        %785 = vmatprep.subr.mxu0 0.0
        %786 = vmatpush1.msra.mxu0 0.0
        %787 = vmatprep.subr.mxu0 0.0
        %788 = vmatpush1.msra.mxu0 0.0
        %789 = vmatprep.subr.mxu0 0.0
        %790 = vmatpush1.msra.mxu0 0.0
        %791 = vmatprep.subr.mxu0 0.0
        %792 = vmatpush1.msra.mxu0 0.0
        %793 = vmatprep.subr.mxu0 0.0
        %794 = vmatpush1.msra.mxu0 0.0
        %795 = vmatprep.subr.mxu0 0.0
        %796 = vmatpush1.msra.mxu0 0.0
        %797 = vmatprep.subr.mxu0 0.0
        %798 = vmatpush1.msra.mxu0 0.0
        %799 = vmatprep.subr.mxu0 0.0
        %800 = vmatpush1.msra.mxu0 0.0
        %801 = vmatprep.subr.mxu0 0.0
        %802 = vmatpush1.msra.mxu0 0.0
        %803 = vmatprep.subr.mxu0 0.0
        %804 = vmatpush1.msra.mxu0 0.0
        %805 = vmatprep.subr.mxu0 0.0
        %806 = vmatpush1.msra.mxu0 0.0
        %807 = vmatprep.subr.mxu0 0.0
        %808 = vmatpush1.msra.mxu0 0.0
        %809 = vmatprep.subr.mxu0 0.0
        %810 = vmatpush1.msra.mxu0 0.0
        %811 = vmatprep.mubr.f32.mxu0 0.0
        %812 = vmatmul.mubr.f32.gmra.mrb[0].mxu0 %v739
        %v813 = vpop.f32.mrb[0].mxu0
        %v814 = vadd.f32 0.0, %v813
        %v815 = vpop.f32.mrb[0].mxu0
        %v816 = vadd.f32 0.0, %v815
        %817 = vdwg.mxu0
        %818 = vmatprep.subr.mxu0 0.0
        %819 = vmatpush1.msra.mxu0 %v745
        %820 = vmatprep.subr.mxu0 0.0
        %821 = vmatpush1.msra.mxu0 0.0
        %822 = vmatprep.subr.mxu0 0.0
        %823 = vmatpush1.msra.mxu0 0.0
        %824 = vmatprep.subr.mxu0 0.0
        %825 = vmatpush1.msra.mxu0 0.0
        %826 = vmatprep.subr.mxu0 0.0
        %827 = vmatpush1.msra.mxu0 0.0
        %828 = vmatprep.subr.mxu0 0.0
        %829 = vmatpush1.msra.mxu0 0.0
        %830 = vmatprep.subr.mxu0 0.0
        %831 = vmatpush1.msra.mxu0 0.0
        %832 = vmatprep.subr.mxu0 0.0
        %833 = vmatpush1.msra.mxu0 0.0
        %834 = vmatprep.subr.mxu0 0.0
        %835 = vmatpush1.msra.mxu0 0.0
        %836 = vmatprep.subr.mxu0 0.0
        %837 = vmatpush1.msra.mxu0 0.0
        %838 = vmatprep.subr.mxu0 0.0
        %839 = vmatpush1.msra.mxu0 0.0
        %840 = vmatprep.subr.mxu0 0.0
        %841 = vmatpush1.msra.mxu0 0.0
        %842 = vmatprep.subr.mxu0 0.0
        %843 = vmatpush1.msra.mxu0 0.0
        %844 = vmatprep.subr.mxu0 0.0
        %845 = vmatpush1.msra.mxu0 0.0
        %846 = vmatprep.subr.mxu0 0.0
        %847 = vmatpush1.msra.mxu0 0.0
        %848 = vmatprep.subr.mxu0 0.0
        %849 = vmatpush1.msra.mxu0 0.0
        %850 = vmatprep.subr.mxu0 0.0
        %851 = vmatpush1.msra.mxu0 0.0
        %852 = vmatprep.subr.mxu0 0.0
        %853 = vmatpush1.msra.mxu0 0.0
        %854 = vmatprep.subr.mxu0 0.0
        %855 = vmatpush1.msra.mxu0 0.0
        %856 = vmatprep.subr.mxu0 0.0
        %857 = vmatpush1.msra.mxu0 0.0
        %858 = vmatprep.subr.mxu0 0.0
        %859 = vmatpush1.msra.mxu0 0.0
        %860 = vmatprep.subr.mxu0 0.0
        %861 = vmatpush1.msra.mxu0 0.0
        %862 = vmatprep.subr.mxu0 0.0
        %863 = vmatpush1.msra.mxu0 0.0
        %864 = vmatprep.subr.mxu0 0.0
        %865 = vmatpush1.msra.mxu0 0.0
        %866 = vmatprep.subr.mxu0 0.0
        %867 = vmatpush1.msra.mxu0 0.0
        %868 = vmatprep.subr.mxu0 0.0
        %869 = vmatpush1.msra.mxu0 0.0
        %870 = vmatprep.subr.mxu0 0.0
        %871 = vmatpush1.msra.mxu0 0.0
        %872 = vmatprep.subr.mxu0 0.0
        %873 = vmatpush1.msra.mxu0 0.0
        %874 = vmatprep.subr.mxu0 0.0
        %875 = vmatpush1.msra.mxu0 0.0
        %876 = vmatprep.subr.mxu0 0.0
        %877 = vmatpush1.msra.mxu0 0.0
        %878 = vmatprep.subr.mxu0 0.0
        %879 = vmatpush1.msra.mxu0 0.0
        %880 = vmatprep.subr.mxu0 0.0
        %881 = vmatpush1.msra.mxu0 0.0
        %882 = vmatprep.mubr.f32.mxu0 0.0
        %883 = vmatmul.mubr.f32.gmra.mrb[0].mxu0 %v739
        %v884 = vpop.f32.mrb[0].mxu0
        %v885 = vadd.f32 0.0, %v884
        %v886 = vpop.f32.mrb[0].mxu0
        %887 = vdwg.mxu0
        %v888 = vadd.f32 %v719, %v814
        %v889 = vadd.f32 %v720, %v816
        %v890 = vadd.f32 %v721, %v885
        %v891 = vld [vmem:[%s229] sm:$0xff]
        %v892 = vld [vmem:[%s229 + $0x8] sm:$0xf]
        %s893 = scalar_lea.vmem %s1, 32
        %v894 = vld [vmem:[%s893] sm:$0xff]
        %v897 = vcombine.high %v891, %v891
        %898 = vrot.lane.b32.xlu0 %v891, 109
        %v899 = vpop.permute.xlu0 %898
        %900 = vrot.lane.b32.xlu0 %v897, 109
        %v901 = vpop.permute.xlu0 %900
        %902 = vrot.lane.b32.xlu0 %v892, 109
        %v903 = vpop.permute.xlu0 %902
        %vm904 = vcmask 891904
        %v905 = vsel %vm904, %v899, %v901
        %v906 = vsel %vm904, %v901, %v903
        %v908 = vsel %vm251, %v894, 0
        %v910 = vsel %vm255, %v905, 0
        %v912 = vsel %vm255, %v906, 0
        %v914 = vsel %vm255, %v903, 0
        %916 = vmatprep.subr.mxu0 %v912
        %917 = vmatpush1.msra.mxu0 %v910
        %918 = vmatprep.subr.mxu0 0.0
        %919 = vmatpush1.msra.mxu0 0.0
        %920 = vmatprep.subr.mxu0 0.0
        %921 = vmatpush1.msra.mxu0 0.0
        %922 = vmatprep.subr.mxu0 0.0
        %923 = vmatpush1.msra.mxu0 0.0
        %924 = vmatprep.subr.mxu0 0.0
        %925 = vmatpush1.msra.mxu0 0.0
        %926 = vmatprep.subr.mxu0 0.0
        %927 = vmatpush1.msra.mxu0 0.0
        %928 = vmatprep.subr.mxu0 0.0
        %929 = vmatpush1.msra.mxu0 0.0
        %930 = vmatprep.subr.mxu0 0.0
        %931 = vmatpush1.msra.mxu0 0.0
        %932 = vmatprep.subr.mxu0 0.0
        %933 = vmatpush1.msra.mxu0 0.0
        %934 = vmatprep.subr.mxu0 0.0
        %935 = vmatpush1.msra.mxu0 0.0
        %936 = vmatprep.subr.mxu0 0.0
        %937 = vmatpush1.msra.mxu0 0.0
        %938 = vmatprep.subr.mxu0 0.0
        %939 = vmatpush1.msra.mxu0 0.0
        %940 = vmatprep.subr.mxu0 0.0
        %941 = vmatpush1.msra.mxu0 0.0
        %942 = vmatprep.subr.mxu0 0.0
        %943 = vmatpush1.msra.mxu0 0.0
        %944 = vmatprep.subr.mxu0 0.0
        %945 = vmatpush1.msra.mxu0 0.0
        %946 = vmatprep.subr.mxu0 0.0
        %947 = vmatpush1.msra.mxu0 0.0
        %948 = vmatprep.subr.mxu0 0.0
        %949 = vmatpush1.msra.mxu0 0.0
        %950 = vmatprep.subr.mxu0 0.0
        %951 = vmatpush1.msra.mxu0 0.0
        %952 = vmatprep.subr.mxu0 0.0
        %953 = vmatpush1.msra.mxu0 0.0
        %954 = vmatprep.subr.mxu0 0.0
        %955 = vmatpush1.msra.mxu0 0.0
        %956 = vmatprep.subr.mxu0 0.0
        %957 = vmatpush1.msra.mxu0 0.0
        %958 = vmatprep.subr.mxu0 0.0
        %959 = vmatpush1.msra.mxu0 0.0
        %960 = vmatprep.subr.mxu0 0.0
        %961 = vmatpush1.msra.mxu0 0.0
        %962 = vmatprep.subr.mxu0 0.0
        %963 = vmatpush1.msra.mxu0 0.0
        %964 = vmatprep.subr.mxu0 0.0
        %965 = vmatpush1.msra.mxu0 0.0
        %966 = vmatprep.subr.mxu0 0.0
        %967 = vmatpush1.msra.mxu0 0.0
        %968 = vmatprep.subr.mxu0 0.0
        %969 = vmatpush1.msra.mxu0 0.0
        %970 = vmatprep.subr.mxu0 0.0
        %971 = vmatpush1.msra.mxu0 0.0
        %972 = vmatprep.subr.mxu0 0.0
        %973 = vmatpush1.msra.mxu0 0.0
        %974 = vmatprep.subr.mxu0 0.0
        %975 = vmatpush1.msra.mxu0 0.0
        %976 = vmatprep.subr.mxu0 0.0
        %977 = vmatpush1.msra.mxu0 0.0
        %978 = vmatprep.subr.mxu0 0.0
        %979 = vmatpush1.msra.mxu0 0.0
        %980 = vmatprep.mubr.f32.mxu0 0.0
        %981 = vmatmul.mubr.f32.gmra.mrb[0].mxu0 %v908
        %v982 = vpop.f32.mrb[0].mxu0
        %v983 = vadd.f32 0.0, %v982
        %v984 = vpop.f32.mrb[0].mxu0
        %v985 = vadd.f32 0.0, %v984
        %986 = vdwg.mxu0
        %987 = vmatprep.subr.mxu0 0.0
        %988 = vmatpush1.msra.mxu0 %v914
        %989 = vmatprep.subr.mxu0 0.0
        %990 = vmatpush1.msra.mxu0 0.0
        %991 = vmatprep.subr.mxu0 0.0
        %992 = vmatpush1.msra.mxu0 0.0
        %993 = vmatprep.subr.mxu0 0.0
        %994 = vmatpush1.msra.mxu0 0.0
        %995 = vmatprep.subr.mxu0 0.0
        %996 = vmatpush1.msra.mxu0 0.0
        %997 = vmatprep.subr.mxu0 0.0
        %998 = vmatpush1.msra.mxu0 0.0
        %999 = vmatprep.subr.mxu0 0.0
        %1000 = vmatpush1.msra.mxu0 0.0
        %1001 = vmatprep.subr.mxu0 0.0
        %1002 = vmatpush1.msra.mxu0 0.0
        %1003 = vmatprep.subr.mxu0 0.0
        %1004 = vmatpush1.msra.mxu0 0.0
        %1005 = vmatprep.subr.mxu0 0.0
        %1006 = vmatpush1.msra.mxu0 0.0
        %1007 = vmatprep.subr.mxu0 0.0
        %1008 = vmatpush1.msra.mxu0 0.0
        %1009 = vmatprep.subr.mxu0 0.0
        %1010 = vmatpush1.msra.mxu0 0.0
        %1011 = vmatprep.subr.mxu0 0.0
        %1012 = vmatpush1.msra.mxu0 0.0
        %1013 = vmatprep.subr.mxu0 0.0
        %1014 = vmatpush1.msra.mxu0 0.0
        %1015 = vmatprep.subr.mxu0 0.0
        %1016 = vmatpush1.msra.mxu0 0.0
        %1017 = vmatprep.subr.mxu0 0.0
        %1018 = vmatpush1.msra.mxu0 0.0
        %1019 = vmatprep.subr.mxu0 0.0
        %1020 = vmatpush1.msra.mxu0 0.0
        %1021 = vmatprep.subr.mxu0 0.0
        %1022 = vmatpush1.msra.mxu0 0.0
        %1023 = vmatprep.subr.mxu0 0.0
        %1024 = vmatpush1.msra.mxu0 0.0
        %1025 = vmatprep.subr.mxu0 0.0
        %1026 = vmatpush1.msra.mxu0 0.0
        %1027 = vmatprep.subr.mxu0 0.0
        %1028 = vmatpush1.msra.mxu0 0.0
        %1029 = vmatprep.subr.mxu0 0.0
        %1030 = vmatpush1.msra.mxu0 0.0
        %1031 = vmatprep.subr.mxu0 0.0
        %1032 = vmatpush1.msra.mxu0 0.0
        %1033 = vmatprep.subr.mxu0 0.0
        %1034 = vmatpush1.msra.mxu0 0.0
        %1035 = vmatprep.subr.mxu0 0.0
        %1036 = vmatpush1.msra.mxu0 0.0
        %1037 = vmatprep.subr.mxu0 0.0
        %1038 = vmatpush1.msra.mxu0 0.0
        %1039 = vmatprep.subr.mxu0 0.0
        %1040 = vmatpush1.msra.mxu0 0.0
        %1041 = vmatprep.subr.mxu0 0.0
        %1042 = vmatpush1.msra.mxu0 0.0
        %1043 = vmatprep.subr.mxu0 0.0
        %1044 = vmatpush1.msra.mxu0 0.0
        %1045 = vmatprep.subr.mxu0 0.0
        %1046 = vmatpush1.msra.mxu0 0.0
        %1047 = vmatprep.subr.mxu0 0.0
        %1048 = vmatpush1.msra.mxu0 0.0
        %1049 = vmatprep.subr.mxu0 0.0
        %1050 = vmatpush1.msra.mxu0 0.0
        %1051 = vmatprep.mubr.f32.mxu0 0.0
        %1052 = vmatmul.mubr.f32.gmra.mrb[0].mxu0 %v908
        %v1053 = vpop.f32.mrb[0].mxu0
        %v1054 = vadd.f32 0.0, %v1053
        %v1055 = vpop.f32.mrb[0].mxu0
        %1056 = vdwg.mxu0
        %v1057 = vadd.f32 %v888, %v983
        %v1058 = vadd.f32 %v889, %v985
        %v1059 = vadd.f32 %v890, %v1054
        %v1060 = vld [vmem:[%s229] sm:$0xff]
        %v1061 = vld [vmem:[%s229 + $0x8] sm:$0xf]
        %s1062 = scalar_lea.vmem %s1, 40
        %v1063 = vld [vmem:[%s1062] sm:$0xff]
        %v1066 = vcombine.high %v1060, %v1060
        %1067 = vrot.lane.b32.xlu0 %v1060, 108
        %v1068 = vpop.permute.xlu0 %1067
        %1069 = vrot.lane.b32.xlu0 %v1066, 108
        %v1070 = vpop.permute.xlu0 %1069
        %1071 = vrot.lane.b32.xlu0 %v1061, 108
        %v1072 = vpop.permute.xlu0 %1071
        %vm1073 = vcmask 883712
        %v1074 = vsel %vm1073, %v1068, %v1070
        %v1075 = vsel %vm1073, %v1070, %v1072
        %v1077 = vsel %vm251, %v1063, 0
        %v1079 = vsel %vm255, %v1074, 0
        %v1081 = vsel %vm255, %v1075, 0
        %v1083 = vsel %vm255, %v1072, 0
        %1085 = vmatprep.subr.mxu0 %v1081
        %1086 = vmatpush1.msra.mxu0 %v1079
        %1087 = vmatprep.subr.mxu0 0.0
        %1088 = vmatpush1.msra.mxu0 0.0
        %1089 = vmatprep.subr.mxu0 0.0
        %1090 = vmatpush1.msra.mxu0 0.0
        %1091 = vmatprep.subr.mxu0 0.0
        %1092 = vmatpush1.msra.mxu0 0.0
        %1093 = vmatprep.subr.mxu0 0.0
        %1094 = vmatpush1.msra.mxu0 0.0
        %1095 = vmatprep.subr.mxu0 0.0
        %1096 = vmatpush1.msra.mxu0 0.0
        %1097 = vmatprep.subr.mxu0 0.0
        %1098 = vmatpush1.msra.mxu0 0.0
        %1099 = vmatprep.subr.mxu0 0.0
        %1100 = vmatpush1.msra.mxu0 0.0
        %1101 = vmatprep.subr.mxu0 0.0
        %1102 = vmatpush1.msra.mxu0 0.0
        %1103 = vmatprep.subr.mxu0 0.0
        %1104 = vmatpush1.msra.mxu0 0.0
        %1105 = vmatprep.subr.mxu0 0.0
        %1106 = vmatpush1.msra.mxu0 0.0
        %1107 = vmatprep.subr.mxu0 0.0
        %1108 = vmatpush1.msra.mxu0 0.0
        %1109 = vmatprep.subr.mxu0 0.0
        %1110 = vmatpush1.msra.mxu0 0.0
        %1111 = vmatprep.subr.mxu0 0.0
        %1112 = vmatpush1.msra.mxu0 0.0
        %1113 = vmatprep.subr.mxu0 0.0
        %1114 = vmatpush1.msra.mxu0 0.0
        %1115 = vmatprep.subr.mxu0 0.0
        %1116 = vmatpush1.msra.mxu0 0.0
        %1117 = vmatprep.subr.mxu0 0.0
        %1118 = vmatpush1.msra.mxu0 0.0
        %1119 = vmatprep.subr.mxu0 0.0
        %1120 = vmatpush1.msra.mxu0 0.0
        %1121 = vmatprep.subr.mxu0 0.0
        %1122 = vmatpush1.msra.mxu0 0.0
        %1123 = vmatprep.subr.mxu0 0.0
        %1124 = vmatpush1.msra.mxu0 0.0
        %1125 = vmatprep.subr.mxu0 0.0
        %1126 = vmatpush1.msra.mxu0 0.0
        %1127 = vmatprep.subr.mxu0 0.0
        %1128 = vmatpush1.msra.mxu0 0.0
        %1129 = vmatprep.subr.mxu0 0.0
        %1130 = vmatpush1.msra.mxu0 0.0
        %1131 = vmatprep.subr.mxu0 0.0
        %1132 = vmatpush1.msra.mxu0 0.0
        %1133 = vmatprep.subr.mxu0 0.0
        %1134 = vmatpush1.msra.mxu0 0.0
        %1135 = vmatprep.subr.mxu0 0.0
        %1136 = vmatpush1.msra.mxu0 0.0
        %1137 = vmatprep.subr.mxu0 0.0
        %1138 = vmatpush1.msra.mxu0 0.0
        %1139 = vmatprep.subr.mxu0 0.0
        %1140 = vmatpush1.msra.mxu0 0.0
        %1141 = vmatprep.subr.mxu0 0.0
        %1142 = vmatpush1.msra.mxu0 0.0
        %1143 = vmatprep.subr.mxu0 0.0
        %1144 = vmatpush1.msra.mxu0 0.0
        %1145 = vmatprep.subr.mxu0 0.0
        %1146 = vmatpush1.msra.mxu0 0.0
        %1147 = vmatprep.subr.mxu0 0.0
        %1148 = vmatpush1.msra.mxu0 0.0
        %1149 = vmatprep.mubr.f32.mxu0 0.0
        %1150 = vmatmul.mubr.f32.gmra.mrb[0].mxu0 %v1077
        %v1151 = vpop.f32.mrb[0].mxu0
        %v1152 = vadd.f32 0.0, %v1151
        %v1153 = vpop.f32.mrb[0].mxu0
        %v1154 = vadd.f32 0.0, %v1153
        %1155 = vdwg.mxu0
        %1156 = vmatprep.subr.mxu0 0.0
        %1157 = vmatpush1.msra.mxu0 %v1083
        %1158 = vmatprep.subr.mxu0 0.0
        %1159 = vmatpush1.msra.mxu0 0.0
        %1160 = vmatprep.subr.mxu0 0.0
        %1161 = vmatpush1.msra.mxu0 0.0
        %1162 = vmatprep.subr.mxu0 0.0
        %1163 = vmatpush1.msra.mxu0 0.0
        %1164 = vmatprep.subr.mxu0 0.0
        %1165 = vmatpush1.msra.mxu0 0.0
        %1166 = vmatprep.subr.mxu0 0.0
        %1167 = vmatpush1.msra.mxu0 0.0
        %1168 = vmatprep.subr.mxu0 0.0
        %1169 = vmatpush1.msra.mxu0 0.0
        %1170 = vmatprep.subr.mxu0 0.0
        %1171 = vmatpush1.msra.mxu0 0.0
        %1172 = vmatprep.subr.mxu0 0.0
        %1173 = vmatpush1.msra.mxu0 0.0
        %1174 = vmatprep.subr.mxu0 0.0
        %1175 = vmatpush1.msra.mxu0 0.0
        %1176 = vmatprep.subr.mxu0 0.0
        %1177 = vmatpush1.msra.mxu0 0.0
        %1178 = vmatprep.subr.mxu0 0.0
        %1179 = vmatpush1.msra.mxu0 0.0
        %1180 = vmatprep.subr.mxu0 0.0
        %1181 = vmatpush1.msra.mxu0 0.0
        %1182 = vmatprep.subr.mxu0 0.0
        %1183 = vmatpush1.msra.mxu0 0.0
        %1184 = vmatprep.subr.mxu0 0.0
        %1185 = vmatpush1.msra.mxu0 0.0
        %1186 = vmatprep.subr.mxu0 0.0
        %1187 = vmatpush1.msra.mxu0 0.0
        %1188 = vmatprep.subr.mxu0 0.0
        %1189 = vmatpush1.msra.mxu0 0.0
        %1190 = vmatprep.subr.mxu0 0.0
        %1191 = vmatpush1.msra.mxu0 0.0
        %1192 = vmatprep.subr.mxu0 0.0
        %1193 = vmatpush1.msra.mxu0 0.0
        %1194 = vmatprep.subr.mxu0 0.0
        %1195 = vmatpush1.msra.mxu0 0.0
        %1196 = vmatprep.subr.mxu0 0.0
        %1197 = vmatpush1.msra.mxu0 0.0
        %1198 = vmatprep.subr.mxu0 0.0
        %1199 = vmatpush1.msra.mxu0 0.0
        %1200 = vmatprep.subr.mxu0 0.0
        %1201 = vmatpush1.msra.mxu0 0.0
        %1202 = vmatprep.subr.mxu0 0.0
        %1203 = vmatpush1.msra.mxu0 0.0
        %1204 = vmatprep.subr.mxu0 0.0
        %1205 = vmatpush1.msra.mxu0 0.0
        %1206 = vmatprep.subr.mxu0 0.0
        %1207 = vmatpush1.msra.mxu0 0.0
        %1208 = vmatprep.subr.mxu0 0.0
        %1209 = vmatpush1.msra.mxu0 0.0
        %1210 = vmatprep.subr.mxu0 0.0
        %1211 = vmatpush1.msra.mxu0 0.0
        %1212 = vmatprep.subr.mxu0 0.0
        %1213 = vmatpush1.msra.mxu0 0.0
        %1214 = vmatprep.subr.mxu0 0.0
        %1215 = vmatpush1.msra.mxu0 0.0
        %1216 = vmatprep.subr.mxu0 0.0
        %1217 = vmatpush1.msra.mxu0 0.0
        %1218 = vmatprep.subr.mxu0 0.0
        %1219 = vmatpush1.msra.mxu0 0.0
        %1220 = vmatprep.mubr.f32.mxu0 0.0
        %1221 = vmatmul.mubr.f32.gmra.mrb[0].mxu0 %v1077
        %v1222 = vpop.f32.mrb[0].mxu0
        %v1223 = vadd.f32 0.0, %v1222
        %v1224 = vpop.f32.mrb[0].mxu0
        %1225 = vdwg.mxu0
        %v1226 = vadd.f32 %v1057, %v1152
        %v1227 = vadd.f32 %v1058, %v1154
        %v1228 = vadd.f32 %v1059, %v1223
        %v1229 = vld [vmem:[%s229] sm:$0xff]
        %v1230 = vld [vmem:[%s229 + $0x8] sm:$0xf]
        %s1231 = scalar_lea.vmem %s1, 48
        %v1232 = vld [vmem:[%s1231] sm:$0xff]
        %v1235 = vcombine.high %v1229, %v1229
        %1236 = vrot.lane.b32.xlu0 %v1229, 92
        %v1237 = vpop.permute.xlu0 %1236
        %1238 = vrot.lane.b32.xlu0 %v1235, 92
        %v1239 = vpop.permute.xlu0 %1238
        %1240 = vrot.lane.b32.xlu0 %v1230, 92
        %v1241 = vpop.permute.xlu0 %1240
        %vm1242 = vcmask 752640
        %v1243 = vsel %vm1242, %v1237, %v1239
        %v1244 = vsel %vm1242, %v1239, %v1241
        %v1246 = vsel %vm251, %v1232, 0
        %v1248 = vsel %vm255, %v1243, 0
        %v1250 = vsel %vm255, %v1244, 0
        %v1252 = vsel %vm255, %v1241, 0
        %1254 = vmatprep.subr.mxu0 %v1250
        %1255 = vmatpush1.msra.mxu0 %v1248
        %1256 = vmatprep.subr.mxu0 0.0
        %1257 = vmatpush1.msra.mxu0 0.0
        %1258 = vmatprep.subr.mxu0 0.0
        %1259 = vmatpush1.msra.mxu0 0.0
        %1260 = vmatprep.subr.mxu0 0.0
        %1261 = vmatpush1.msra.mxu0 0.0
        %1262 = vmatprep.subr.mxu0 0.0
        %1263 = vmatpush1.msra.mxu0 0.0
        %1264 = vmatprep.subr.mxu0 0.0
        %1265 = vmatpush1.msra.mxu0 0.0
        %1266 = vmatprep.subr.mxu0 0.0
        %1267 = vmatpush1.msra.mxu0 0.0
        %1268 = vmatprep.subr.mxu0 0.0
        %1269 = vmatpush1.msra.mxu0 0.0
        %1270 = vmatprep.subr.mxu0 0.0
        %1271 = vmatpush1.msra.mxu0 0.0
        %1272 = vmatprep.subr.mxu0 0.0
        %1273 = vmatpush1.msra.mxu0 0.0
        %1274 = vmatprep.subr.mxu0 0.0
        %1275 = vmatpush1.msra.mxu0 0.0
        %1276 = vmatprep.subr.mxu0 0.0
        %1277 = vmatpush1.msra.mxu0 0.0
        %1278 = vmatprep.subr.mxu0 0.0
        %1279 = vmatpush1.msra.mxu0 0.0
        %1280 = vmatprep.subr.mxu0 0.0
        %1281 = vmatpush1.msra.mxu0 0.0
        %1282 = vmatprep.subr.mxu0 0.0
        %1283 = vmatpush1.msra.mxu0 0.0
        %1284 = vmatprep.subr.mxu0 0.0
        %1285 = vmatpush1.msra.mxu0 0.0
        %1286 = vmatprep.subr.mxu0 0.0
        %1287 = vmatpush1.msra.mxu0 0.0
        %1288 = vmatprep.subr.mxu0 0.0
        %1289 = vmatpush1.msra.mxu0 0.0
        %1290 = vmatprep.subr.mxu0 0.0
        %1291 = vmatpush1.msra.mxu0 0.0
        %1292 = vmatprep.subr.mxu0 0.0
        %1293 = vmatpush1.msra.mxu0 0.0
        %1294 = vmatprep.subr.mxu0 0.0
        %1295 = vmatpush1.msra.mxu0 0.0
        %1296 = vmatprep.subr.mxu0 0.0
        %1297 = vmatpush1.msra.mxu0 0.0
        %1298 = vmatprep.subr.mxu0 0.0
        %1299 = vmatpush1.msra.mxu0 0.0
        %1300 = vmatprep.subr.mxu0 0.0
        %1301 = vmatpush1.msra.mxu0 0.0
        %1302 = vmatprep.subr.mxu0 0.0
        %1303 = vmatpush1.msra.mxu0 0.0
        %1304 = vmatprep.subr.mxu0 0.0
        %1305 = vmatpush1.msra.mxu0 0.0
        %1306 = vmatprep.subr.mxu0 0.0
        %1307 = vmatpush1.msra.mxu0 0.0
        %1308 = vmatprep.subr.mxu0 0.0
        %1309 = vmatpush1.msra.mxu0 0.0
        %1310 = vmatprep.subr.mxu0 0.0
        %1311 = vmatpush1.msra.mxu0 0.0
        %1312 = vmatprep.subr.mxu0 0.0
        %1313 = vmatpush1.msra.mxu0 0.0
        %1314 = vmatprep.subr.mxu0 0.0
        %1315 = vmatpush1.msra.mxu0 0.0
        %1316 = vmatprep.subr.mxu0 0.0
        %1317 = vmatpush1.msra.mxu0 0.0
        %1318 = vmatprep.mubr.f32.mxu0 0.0
        %1319 = vmatmul.mubr.f32.gmra.mrb[0].mxu0 %v1246
        %v1320 = vpop.f32.mrb[0].mxu0
        %v1321 = vadd.f32 0.0, %v1320
        %v1322 = vpop.f32.mrb[0].mxu0
        %v1323 = vadd.f32 0.0, %v1322
        %1324 = vdwg.mxu0
        %1325 = vmatprep.subr.mxu0 0.0
        %1326 = vmatpush1.msra.mxu0 %v1252
        %1327 = vmatprep.subr.mxu0 0.0
        %1328 = vmatpush1.msra.mxu0 0.0
        %1329 = vmatprep.subr.mxu0 0.0
        %1330 = vmatpush1.msra.mxu0 0.0
        %1331 = vmatprep.subr.mxu0 0.0
        %1332 = vmatpush1.msra.mxu0 0.0
        %1333 = vmatprep.subr.mxu0 0.0
        %1334 = vmatpush1.msra.mxu0 0.0
        %1335 = vmatprep.subr.mxu0 0.0
        %1336 = vmatpush1.msra.mxu0 0.0
        %1337 = vmatprep.subr.mxu0 0.0
        %1338 = vmatpush1.msra.mxu0 0.0
        %1339 = vmatprep.subr.mxu0 0.0
        %1340 = vmatpush1.msra.mxu0 0.0
        %1341 = vmatprep.subr.mxu0 0.0
        %1342 = vmatpush1.msra.mxu0 0.0
        %1343 = vmatprep.subr.mxu0 0.0
        %1344 = vmatpush1.msra.mxu0 0.0
        %1345 = vmatprep.subr.mxu0 0.0
        %1346 = vmatpush1.msra.mxu0 0.0
        %1347 = vmatprep.subr.mxu0 0.0
        %1348 = vmatpush1.msra.mxu0 0.0
        %1349 = vmatprep.subr.mxu0 0.0
        %1350 = vmatpush1.msra.mxu0 0.0
        %1351 = vmatprep.subr.mxu0 0.0
        %1352 = vmatpush1.msra.mxu0 0.0
        %1353 = vmatprep.subr.mxu0 0.0
        %1354 = vmatpush1.msra.mxu0 0.0
        %1355 = vmatprep.subr.mxu0 0.0
        %1356 = vmatpush1.msra.mxu0 0.0
        %1357 = vmatprep.subr.mxu0 0.0
        %1358 = vmatpush1.msra.mxu0 0.0
        %1359 = vmatprep.subr.mxu0 0.0
        %1360 = vmatpush1.msra.mxu0 0.0
        %1361 = vmatprep.subr.mxu0 0.0
        %1362 = vmatpush1.msra.mxu0 0.0
        %1363 = vmatprep.subr.mxu0 0.0
        %1364 = vmatpush1.msra.mxu0 0.0
        %1365 = vmatprep.subr.mxu0 0.0
        %1366 = vmatpush1.msra.mxu0 0.0
        %1367 = vmatprep.subr.mxu0 0.0
        %1368 = vmatpush1.msra.mxu0 0.0
        %1369 = vmatprep.subr.mxu0 0.0
        %1370 = vmatpush1.msra.mxu0 0.0
        %1371 = vmatprep.subr.mxu0 0.0
        %1372 = vmatpush1.msra.mxu0 0.0
        %1373 = vmatprep.subr.mxu0 0.0
        %1374 = vmatpush1.msra.mxu0 0.0
        %1375 = vmatprep.subr.mxu0 0.0
        %1376 = vmatpush1.msra.mxu0 0.0
        %1377 = vmatprep.subr.mxu0 0.0
        %1378 = vmatpush1.msra.mxu0 0.0
        %1379 = vmatprep.subr.mxu0 0.0
        %1380 = vmatpush1.msra.mxu0 0.0
        %1381 = vmatprep.subr.mxu0 0.0
        %1382 = vmatpush1.msra.mxu0 0.0
        %1383 = vmatprep.subr.mxu0 0.0
        %1384 = vmatpush1.msra.mxu0 0.0
        %1385 = vmatprep.subr.mxu0 0.0
        %1386 = vmatpush1.msra.mxu0 0.0
        %1387 = vmatprep.subr.mxu0 0.0
        %1388 = vmatpush1.msra.mxu0 0.0
        %1389 = vmatprep.mubr.f32.mxu0 0.0
        %1390 = vmatmul.mubr.f32.gmra.mrb[0].mxu0 %v1246
        %v1391 = vpop.f32.mrb[0].mxu0
        %v1392 = vadd.f32 0.0, %v1391
        %v1393 = vpop.f32.mrb[0].mxu0
        %1394 = vdwg.mxu0
        %v1395 = vadd.f32 %v1226, %v1321
        %v1396 = vadd.f32 %v1227, %v1323
        %v1397 = vadd.f32 %v1228, %v1392
        %v1398 = vld [vmem:[%s229] sm:$0xff]
        %v1399 = vld [vmem:[%s229 + $0x8] sm:$0xf]
        %s1400 = scalar_lea.vmem %s1, 56
        %v1401 = vld [vmem:[%s1400] sm:$0xff]
        %v1404 = vcombine.high %v1398, %v1398
        %1405 = vrot.lane.b32.xlu0 %v1398, 91
        %v1406 = vpop.permute.xlu0 %1405
        %1407 = vrot.lane.b32.xlu0 %v1404, 91
        %v1408 = vpop.permute.xlu0 %1407
        %1409 = vrot.lane.b32.xlu0 %v1399, 91
        %v1410 = vpop.permute.xlu0 %1409
        %vm1411 = vcmask 744448
        %v1412 = vsel %vm1411, %v1406, %v1408
        %v1413 = vsel %vm1411, %v1408, %v1410
        %v1415 = vsel %vm251, %v1401, 0
        %v1417 = vsel %vm255, %v1412, 0
        %v1419 = vsel %vm255, %v1413, 0
        %v1421 = vsel %vm255, %v1410, 0
        %1423 = vmatprep.subr.mxu0 %v1419
        %1424 = vmatpush1.msra.mxu0 %v1417
        %1425 = vmatprep.subr.mxu0 0.0
        %1426 = vmatpush1.msra.mxu0 0.0
        %1427 = vmatprep.subr.mxu0 0.0
        %1428 = vmatpush1.msra.mxu0 0.0
        %1429 = vmatprep.subr.mxu0 0.0
        %1430 = vmatpush1.msra.mxu0 0.0
        %1431 = vmatprep.subr.mxu0 0.0
        %1432 = vmatpush1.msra.mxu0 0.0
        %1433 = vmatprep.subr.mxu0 0.0
        %1434 = vmatpush1.msra.mxu0 0.0
        %1435 = vmatprep.subr.mxu0 0.0
        %1436 = vmatpush1.msra.mxu0 0.0
        %1437 = vmatprep.subr.mxu0 0.0
        %1438 = vmatpush1.msra.mxu0 0.0
        %1439 = vmatprep.subr.mxu0 0.0
        %1440 = vmatpush1.msra.mxu0 0.0
        %1441 = vmatprep.subr.mxu0 0.0
        %1442 = vmatpush1.msra.mxu0 0.0
        %1443 = vmatprep.subr.mxu0 0.0
        %1444 = vmatpush1.msra.mxu0 0.0
        %1445 = vmatprep.subr.mxu0 0.0
        %1446 = vmatpush1.msra.mxu0 0.0
        %1447 = vmatprep.subr.mxu0 0.0
        %1448 = vmatpush1.msra.mxu0 0.0
        %1449 = vmatprep.subr.mxu0 0.0
        %1450 = vmatpush1.msra.mxu0 0.0
        %1451 = vmatprep.subr.mxu0 0.0
        %1452 = vmatpush1.msra.mxu0 0.0
        %1453 = vmatprep.subr.mxu0 0.0
        %1454 = vmatpush1.msra.mxu0 0.0
        %1455 = vmatprep.subr.mxu0 0.0
        %1456 = vmatpush1.msra.mxu0 0.0
        %1457 = vmatprep.subr.mxu0 0.0
        %1458 = vmatpush1.msra.mxu0 0.0
        %1459 = vmatprep.subr.mxu0 0.0
        %1460 = vmatpush1.msra.mxu0 0.0
        %1461 = vmatprep.subr.mxu0 0.0
        %1462 = vmatpush1.msra.mxu0 0.0
        %1463 = vmatprep.subr.mxu0 0.0
        %1464 = vmatpush1.msra.mxu0 0.0
        %1465 = vmatprep.subr.mxu0 0.0
        %1466 = vmatpush1.msra.mxu0 0.0
        %1467 = vmatprep.subr.mxu0 0.0
        %1468 = vmatpush1.msra.mxu0 0.0
        %1469 = vmatprep.subr.mxu0 0.0
        %1470 = vmatpush1.msra.mxu0 0.0
        %1471 = vmatprep.subr.mxu0 0.0
        %1472 = vmatpush1.msra.mxu0 0.0
        %1473 = vmatprep.subr.mxu0 0.0
        %1474 = vmatpush1.msra.mxu0 0.0
        %1475 = vmatprep.subr.mxu0 0.0
        %1476 = vmatpush1.msra.mxu0 0.0
        %1477 = vmatprep.subr.mxu0 0.0
        %1478 = vmatpush1.msra.mxu0 0.0
        %1479 = vmatprep.subr.mxu0 0.0
        %1480 = vmatpush1.msra.mxu0 0.0
        %1481 = vmatprep.subr.mxu0 0.0
        %1482 = vmatpush1.msra.mxu0 0.0
        %1483 = vmatprep.subr.mxu0 0.0
        %1484 = vmatpush1.msra.mxu0 0.0
        %1485 = vmatprep.subr.mxu0 0.0
        %1486 = vmatpush1.msra.mxu0 0.0
        %1487 = vmatprep.mubr.f32.mxu0 0.0
        %1488 = vmatmul.mubr.f32.gmra.mrb[0].mxu0 %v1415
        %v1489 = vpop.f32.mrb[0].mxu0
        %v1490 = vadd.f32 0.0, %v1489
        %v1491 = vpop.f32.mrb[0].mxu0
        %v1492 = vadd.f32 0.0, %v1491
        %1493 = vdwg.mxu0
        %1494 = vmatprep.subr.mxu0 0.0
        %1495 = vmatpush1.msra.mxu0 %v1421
        %1496 = vmatprep.subr.mxu0 0.0
        %1497 = vmatpush1.msra.mxu0 0.0
        %1498 = vmatprep.subr.mxu0 0.0
        %1499 = vmatpush1.msra.mxu0 0.0
        %1500 = vmatprep.subr.mxu0 0.0
        %1501 = vmatpush1.msra.mxu0 0.0
        %1502 = vmatprep.subr.mxu0 0.0
        %1503 = vmatpush1.msra.mxu0 0.0
        %1504 = vmatprep.subr.mxu0 0.0
        %1505 = vmatpush1.msra.mxu0 0.0
        %1506 = vmatprep.subr.mxu0 0.0
        %1507 = vmatpush1.msra.mxu0 0.0
        %1508 = vmatprep.subr.mxu0 0.0
        %1509 = vmatpush1.msra.mxu0 0.0
        %1510 = vmatprep.subr.mxu0 0.0
        %1511 = vmatpush1.msra.mxu0 0.0
        %1512 = vmatprep.subr.mxu0 0.0
        %1513 = vmatpush1.msra.mxu0 0.0
        %1514 = vmatprep.subr.mxu0 0.0
        %1515 = vmatpush1.msra.mxu0 0.0
        %1516 = vmatprep.subr.mxu0 0.0
        %1517 = vmatpush1.msra.mxu0 0.0
        %1518 = vmatprep.subr.mxu0 0.0
        %1519 = vmatpush1.msra.mxu0 0.0
        %1520 = vmatprep.subr.mxu0 0.0
        %1521 = vmatpush1.msra.mxu0 0.0
        %1522 = vmatprep.subr.mxu0 0.0
        %1523 = vmatpush1.msra.mxu0 0.0
        %1524 = vmatprep.subr.mxu0 0.0
        %1525 = vmatpush1.msra.mxu0 0.0
        %1526 = vmatprep.subr.mxu0 0.0
        %1527 = vmatpush1.msra.mxu0 0.0
        %1528 = vmatprep.subr.mxu0 0.0
        %1529 = vmatpush1.msra.mxu0 0.0
        %1530 = vmatprep.subr.mxu0 0.0
        %1531 = vmatpush1.msra.mxu0 0.0
        %1532 = vmatprep.subr.mxu0 0.0
        %1533 = vmatpush1.msra.mxu0 0.0
        %1534 = vmatprep.subr.mxu0 0.0
        %1535 = vmatpush1.msra.mxu0 0.0
        %1536 = vmatprep.subr.mxu0 0.0
        %1537 = vmatpush1.msra.mxu0 0.0
        %1538 = vmatprep.subr.mxu0 0.0
        %1539 = vmatpush1.msra.mxu0 0.0
        %1540 = vmatprep.subr.mxu0 0.0
        %1541 = vmatpush1.msra.mxu0 0.0
        %1542 = vmatprep.subr.mxu0 0.0
        %1543 = vmatpush1.msra.mxu0 0.0
        %1544 = vmatprep.subr.mxu0 0.0
        %1545 = vmatpush1.msra.mxu0 0.0
        %1546 = vmatprep.subr.mxu0 0.0
        %1547 = vmatpush1.msra.mxu0 0.0
        %1548 = vmatprep.subr.mxu0 0.0
        %1549 = vmatpush1.msra.mxu0 0.0
        %1550 = vmatprep.subr.mxu0 0.0
        %1551 = vmatpush1.msra.mxu0 0.0
        %1552 = vmatprep.subr.mxu0 0.0
        %1553 = vmatpush1.msra.mxu0 0.0
        %1554 = vmatprep.subr.mxu0 0.0
        %1555 = vmatpush1.msra.mxu0 0.0
        %1556 = vmatprep.subr.mxu0 0.0
        %1557 = vmatpush1.msra.mxu0 0.0
        %1558 = vmatprep.mubr.f32.mxu0 0.0
        %1559 = vmatmul.mubr.f32.gmra.mrb[0].mxu0 %v1415
        %v1560 = vpop.f32.mrb[0].mxu0
        %v1561 = vadd.f32 0.0, %v1560
        %v1562 = vpop.f32.mrb[0].mxu0
        %1563 = vdwg.mxu0
        %v1564 = vadd.f32 %v1395, %v1490
        %v1565 = vadd.f32 %v1396, %v1492
        %v1566 = vadd.f32 %v1397, %v1561
        %v1567 = vld [vmem:[%s229] sm:$0xff]
        %v1568 = vld [vmem:[%s229 + $0x8] sm:$0xf]
        %s1569 = scalar_lea.vmem %s1, 64
        %v1570 = vld [vmem:[%s1569] sm:$0xff]
        %v1573 = vcombine.high %v1567, %v1567
        %1574 = vrot.lane.b32.xlu0 %v1567, 90
        %v1575 = vpop.permute.xlu0 %1574
        %1576 = vrot.lane.b32.xlu0 %v1573, 90
        %v1577 = vpop.permute.xlu0 %1576
        %1578 = vrot.lane.b32.xlu0 %v1568, 90
        %v1579 = vpop.permute.xlu0 %1578
        %vm1580 = vcmask 736256
        %v1581 = vsel %vm1580, %v1575, %v1577
        %v1582 = vsel %vm1580, %v1577, %v1579
        %v1584 = vsel %vm251, %v1570, 0
        %v1586 = vsel %vm255, %v1581, 0
        %v1588 = vsel %vm255, %v1582, 0
        %v1590 = vsel %vm255, %v1579, 0
        %1592 = vmatprep.subr.mxu0 %v1588
        %1593 = vmatpush1.msra.mxu0 %v1586
        %1594 = vmatprep.subr.mxu0 0.0
        %1595 = vmatpush1.msra.mxu0 0.0
        %1596 = vmatprep.subr.mxu0 0.0
        %1597 = vmatpush1.msra.mxu0 0.0
        %1598 = vmatprep.subr.mxu0 0.0
        %1599 = vmatpush1.msra.mxu0 0.0
        %1600 = vmatprep.subr.mxu0 0.0
        %1601 = vmatpush1.msra.mxu0 0.0
        %1602 = vmatprep.subr.mxu0 0.0
        %1603 = vmatpush1.msra.mxu0 0.0
        %1604 = vmatprep.subr.mxu0 0.0
        %1605 = vmatpush1.msra.mxu0 0.0
        %1606 = vmatprep.subr.mxu0 0.0
        %1607 = vmatpush1.msra.mxu0 0.0
        %1608 = vmatprep.subr.mxu0 0.0
        %1609 = vmatpush1.msra.mxu0 0.0
        %1610 = vmatprep.subr.mxu0 0.0
        %1611 = vmatpush1.msra.mxu0 0.0
        %1612 = vmatprep.subr.mxu0 0.0
        %1613 = vmatpush1.msra.mxu0 0.0
        %1614 = vmatprep.subr.mxu0 0.0
        %1615 = vmatpush1.msra.mxu0 0.0
        %1616 = vmatprep.subr.mxu0 0.0
        %1617 = vmatpush1.msra.mxu0 0.0
        %1618 = vmatprep.subr.mxu0 0.0
        %1619 = vmatpush1.msra.mxu0 0.0
        %1620 = vmatprep.subr.mxu0 0.0
        %1621 = vmatpush1.msra.mxu0 0.0
        %1622 = vmatprep.subr.mxu0 0.0
        %1623 = vmatpush1.msra.mxu0 0.0
        %1624 = vmatprep.subr.mxu0 0.0
        %1625 = vmatpush1.msra.mxu0 0.0
        %1626 = vmatprep.subr.mxu0 0.0
        %1627 = vmatpush1.msra.mxu0 0.0
        %1628 = vmatprep.subr.mxu0 0.0
        %1629 = vmatpush1.msra.mxu0 0.0
        %1630 = vmatprep.subr.mxu0 0.0
        %1631 = vmatpush1.msra.mxu0 0.0
        %1632 = vmatprep.subr.mxu0 0.0
        %1633 = vmatpush1.msra.mxu0 0.0
        %1634 = vmatprep.subr.mxu0 0.0
        %1635 = vmatpush1.msra.mxu0 0.0
        %1636 = vmatprep.subr.mxu0 0.0
        %1637 = vmatpush1.msra.mxu0 0.0
        %1638 = vmatprep.subr.mxu0 0.0
        %1639 = vmatpush1.msra.mxu0 0.0
        %1640 = vmatprep.subr.mxu0 0.0
        %1641 = vmatpush1.msra.mxu0 0.0
        %1642 = vmatprep.subr.mxu0 0.0
        %1643 = vmatpush1.msra.mxu0 0.0
        %1644 = vmatprep.subr.mxu0 0.0
        %1645 = vmatpush1.msra.mxu0 0.0
        %1646 = vmatprep.subr.mxu0 0.0
        %1647 = vmatpush1.msra.mxu0 0.0
        %1648 = vmatprep.subr.mxu0 0.0
        %1649 = vmatpush1.msra.mxu0 0.0
        %1650 = vmatprep.subr.mxu0 0.0
        %1651 = vmatpush1.msra.mxu0 0.0
        %1652 = vmatprep.subr.mxu0 0.0
        %1653 = vmatpush1.msra.mxu0 0.0
        %1654 = vmatprep.subr.mxu0 0.0
        %1655 = vmatpush1.msra.mxu0 0.0
        %1656 = vmatprep.mubr.f32.mxu0 0.0
        %1657 = vmatmul.mubr.f32.gmra.mrb[0].mxu0 %v1584
        %v1658 = vpop.f32.mrb[0].mxu0
        %v1659 = vadd.f32 0.0, %v1658
        %v1660 = vpop.f32.mrb[0].mxu0
        %v1661 = vadd.f32 0.0, %v1660
        %1662 = vdwg.mxu0
        %1663 = vmatprep.subr.mxu0 0.0
        %1664 = vmatpush1.msra.mxu0 %v1590
        %1665 = vmatprep.subr.mxu0 0.0
        %1666 = vmatpush1.msra.mxu0 0.0
        %1667 = vmatprep.subr.mxu0 0.0
        %1668 = vmatpush1.msra.mxu0 0.0
        %1669 = vmatprep.subr.mxu0 0.0
        %1670 = vmatpush1.msra.mxu0 0.0
        %1671 = vmatprep.subr.mxu0 0.0
        %1672 = vmatpush1.msra.mxu0 0.0
        %1673 = vmatprep.subr.mxu0 0.0
        %1674 = vmatpush1.msra.mxu0 0.0
        %1675 = vmatprep.subr.mxu0 0.0
        %1676 = vmatpush1.msra.mxu0 0.0
        %1677 = vmatprep.subr.mxu0 0.0
        %1678 = vmatpush1.msra.mxu0 0.0
        %1679 = vmatprep.subr.mxu0 0.0
        %1680 = vmatpush1.msra.mxu0 0.0
        %1681 = vmatprep.subr.mxu0 0.0
        %1682 = vmatpush1.msra.mxu0 0.0
        %1683 = vmatprep.subr.mxu0 0.0
        %1684 = vmatpush1.msra.mxu0 0.0
        %1685 = vmatprep.subr.mxu0 0.0
        %1686 = vmatpush1.msra.mxu0 0.0
        %1687 = vmatprep.subr.mxu0 0.0
        %1688 = vmatpush1.msra.mxu0 0.0
        %1689 = vmatprep.subr.mxu0 0.0
        %1690 = vmatpush1.msra.mxu0 0.0
        %1691 = vmatprep.subr.mxu0 0.0
        %1692 = vmatpush1.msra.mxu0 0.0
        %1693 = vmatprep.subr.mxu0 0.0
        %1694 = vmatpush1.msra.mxu0 0.0
        %1695 = vmatprep.subr.mxu0 0.0
        %1696 = vmatpush1.msra.mxu0 0.0
        %1697 = vmatprep.subr.mxu0 0.0
        %1698 = vmatpush1.msra.mxu0 0.0
        %1699 = vmatprep.subr.mxu0 0.0
        %1700 = vmatpush1.msra.mxu0 0.0
        %1701 = vmatprep.subr.mxu0 0.0
        %1702 = vmatpush1.msra.mxu0 0.0
        %1703 = vmatprep.subr.mxu0 0.0
        %1704 = vmatpush1.msra.mxu0 0.0
        %1705 = vmatprep.subr.mxu0 0.0
        %1706 = vmatpush1.msra.mxu0 0.0
        %1707 = vmatprep.subr.mxu0 0.0
        %1708 = vmatpush1.msra.mxu0 0.0
        %1709 = vmatprep.subr.mxu0 0.0
        %1710 = vmatpush1.msra.mxu0 0.0
        %1711 = vmatprep.subr.mxu0 0.0
        %1712 = vmatpush1.msra.mxu0 0.0
        %1713 = vmatprep.subr.mxu0 0.0
        %1714 = vmatpush1.msra.mxu0 0.0
        %1715 = vmatprep.subr.mxu0 0.0
        %1716 = vmatpush1.msra.mxu0 0.0
        %1717 = vmatprep.subr.mxu0 0.0
        %1718 = vmatpush1.msra.mxu0 0.0
        %1719 = vmatprep.subr.mxu0 0.0
        %1720 = vmatpush1.msra.mxu0 0.0
        %1721 = vmatprep.subr.mxu0 0.0
        %1722 = vmatpush1.msra.mxu0 0.0
        %1723 = vmatprep.subr.mxu0 0.0
        %1724 = vmatpush1.msra.mxu0 0.0
        %1725 = vmatprep.subr.mxu0 0.0
        %1726 = vmatpush1.msra.mxu0 0.0
        %1727 = vmatprep.mubr.f32.mxu0 0.0
        %1728 = vmatmul.mubr.f32.gmra.mrb[0].mxu0 %v1584
        %v1729 = vpop.f32.mrb[0].mxu0
        %v1730 = vadd.f32 0.0, %v1729
        %v1731 = vpop.f32.mrb[0].mxu0
        %1732 = vdwg.mxu0
        %v1733 = vadd.f32 %v1564, %v1659
        %v1734 = vadd.f32 %v1565, %v1661
        %v1735 = vadd.f32 %v1566, %v1730
        %v1736 = vld [vmem:[%s2] sm:$0xff]
        %1738 = vset.pattern.permute.xlu0 0
        %1739 = vperm.xlu0 %1738, %v1736
        %v1740 = vpop.permute.xlu0 %1739
        %v1742 = vadd.f32 %v1733, %v1740
        %v1743 = vadd.f32 %v1734, %v1740
        %v1744 = vadd.f32 %v1735, %v1740
        %1745 = vst [vmem:[%s218] sm:$0xff] %v1742
        %1746 = vst [vmem:[%s218 + $0x8] sm:$0xff] %v1743
        %vm1747 = vcmask 261120
        %1748 = vst.msk [vmem:[%s218 + $0x10] sm:$0xff] %vm1747, %v1744
        %v1749 = vld [vmem:[%s3] sm:$0x7]
        %v1751 = vlaneseq
        %v1752 = vshrl.u32 %v1751, 7
        %v1753 = vsub.s32 0, %v1752
        %v1754 = vrot.slane %v1749, %v1753
        %v1755 = vlaneseq
        %v1756 = vshrl.u32 %v1755, 7
        %v1757 = vsub.s32 1, %v1756
        %v1758 = vrot.slane %v1749, %v1757
        %v1759 = vlaneseq
        %v1760 = vshrl.u32 %v1759, 7
        %v1761 = vsub.s32 2, %v1760
        %v1762 = vrot.slane %v1749, %v1761
        %v1766 = vmul.f32 %v1742, %v1754
        %v1767 = vmul.f32 %v1743, %v1758
        %v1768 = vmul.f32 %v1744, %v1762
        %v1769 = vadd.f32 %v1766, %v1767
        %v1770 = vsel %vm1747, %v1768, 0.0
        %v1771 = vadd.f32 %v1769, %v1770
        %1772 = vadd.xlane.f32.xlu0 %v1771
        %v1773 = vpop.xlane.xlu0 %1772
        %v1774 = vmul.f32 %v1766, %v1766
        %v1775 = vmul.f32 %v1767, %v1767
        %v1776 = vmul.f32 %v1768, %v1768
        %v1777 = vadd.f32 %v1774, %v1775
        %v1778 = vsel %vm1747, %v1776, 0.0
        %v1779 = vadd.f32 %v1777, %v1778
        %1780 = vadd.xlane.f32.xlu0 %v1779
        %v1781 = vpop.xlane.xlu0 %1780
        %vm1782 = vcmask 7168
        %v1783 = vsel %vm1782, %v1773, %v1781
        %vm1784 = vcmask 15360
        %1785 = vst.msk [vmem:[%s233] sm:$0xff] %vm1784, %v1783
        %s1786 = sand.u32 %s117, 1
        %s1787 = scalar_lea.sflag [#allocation3], %s1786
        %s1788 = sand.u32 %s117, 1
        %s1789 = smul.addr %s1788, 24
        %s1790 = scalar_lea.vmem [#allocation2], %s1789
        %p1791 = scmp.lt.s32.totalorder %s20, 1
        %s1792 = scalar_select %p1791, %s20, 1
        %s1793 = smul.addr %s1792, 8
        %s1794 = scalar_lea.vmem %s5, %s1793
        // Predicated region
        $region37: #{tpu_custom_call.1} parent=35 // pred_check
          %p1795 = pneg %p127
        $region38: #{tpu_custom_call.1} parent=35 // pred_check_branch
          %1797 = sbr.rel (%p1795) target = $region40
        $region39: #{tpu_custom_call.1} parent=35 // pred_region
          %s1799 = ssub.s32 384, 384
          %1800 = vsyncadd %s1787, %s1799
          %s1801 = smul.addr %s20, 3
          %s1802 = smul.addr %s1801, 128
          %s1803 = scalar_lea.hbm %s4, %s1802
          %s1805 = sshll.u32 %s1790, 4
          %s1806 = int_to_ptr.vmem [resolvable:$true] %s1805
          %1808 = dma.vmem_to_hbm [thread:$0]  %s1806, 384, %s1803, %s1787
        $region40: #{tpu_custom_call.1} parent=35 // pred_fallthru
          _
        // Predicated region
        $region41: #{tpu_custom_call.1} parent=35 // pred_check
          %p1809 = pneg %p153
        $region42: #{tpu_custom_call.1} parent=35 // pred_check_branch
          %1811 = sbr.rel (%p1809) target = $region44
        $region43: #{tpu_custom_call.1} parent=35 // pred_region
          _
        $region44: #{tpu_custom_call.1} parent=35 // pred_fallthru
          _
      $region36: #{tpu_custom_call.1} parent=5 // pred_fallthru
        _
      %p1812 = scmp.le.s32.totalorder 2, %s15
      // Predicated region
      $region45: #{tpu_custom_call.1} parent=5 // pred_check
        %p1813 = pneg %p1812
      $region46: #{tpu_custom_call.1} parent=5 // pred_check_branch
        %1815 = sbr.rel (%p1813) target = $region48
      $region47: #{tpu_custom_call.1} parent=5 // pred_region
        %s1816 = ssub.s32 %s15, 2
        // Predicated region
        $region49: #{tpu_custom_call.1} parent=47 // pred_check
          %p1817 = pneg %p133
        $region50: #{tpu_custom_call.1} parent=47 // pred_check_branch
          %1819 = sbr.rel (%p1817) target = $region52
        $region51: #{tpu_custom_call.1} parent=47 // pred_region
          %s1820 = sand.u32 %s118, 1
          %s1821 = scalar_lea.sflag [#allocation3], %s1820
          %s1822 = sand.u32 %s118, 1
          %s1823 = smul.addr %s1822, 24
          %s1824 = scalar_lea.vmem [#allocation2], %s1823
          %1825 = dma.done %s1821, 384
        $region52: #{tpu_custom_call.1} parent=47 // pred_fallthru
          _
        // Predicated region
        $region53: #{tpu_custom_call.1} parent=47 // pred_check
          %p1826 = pneg %p159
        $region54: #{tpu_custom_call.1} parent=47 // pred_check_branch
          %1828 = sbr.rel (%p1826) target = $region56
        $region55: #{tpu_custom_call.1} parent=47 // pred_region
          %p1829 = scmp.lt.s32.totalorder %s21, 1
          %s1830 = scalar_select %p1829, %s21, 1
          %s1831 = smul.addr %s1830, 8
          %s1832 = scalar_lea.vmem %s5, %s1831
        $region56: #{tpu_custom_call.1} parent=47 // pred_fallthru
          _
      $region48: #{tpu_custom_call.1} parent=5 // pred_fallthru
        _
    $region6: #{tpu_custom_call.1} parent=1 // loop_footer
      %s19 = sadd.s32 1, %s15
    $region7: #{tpu_custom_call.1} parent=1 // loop_footer_branch
      %14 = sbr.rel target = $region3
    $region8: #{tpu_custom_call.1} parent=1 // loop_exit
      _
    %1833 = vsyncpa [#allocation3], 1
    %s1834 = scalar_lea.sflag [#allocation3], 1
    %1835 = vsyncpa %s1834, 1

</llo_original>
